<compile_context>
chip_gen: v5e
topology: v5e:2x2
jax: 0.10.0
libtpu: 0.0.40
codegen_flags: <defaults>
</compile_context>

<pallas_src>
import jax
import jax.numpy as jnp
from jax import lax
from jax.experimental import pallas as pl
from jax.experimental.pallas import tpu as pltpu


# ----------------------------- Pallas kernel ---------------------------------
def _decoder_kernel(x_ref, mconv_ref, vec_ref, wh_ref, mw_ref, gate2_ref,
                    psum_ref, psel_ref, bc_ref, se1_ref, se2_ref, out_ref):
    Mb = x_ref.shape[0]                 # nb * Hpad   (stacked, padded input rows)
    Mv = Mb - 2                         # rows for which the 3-row window is in-bounds
    WC = mconv_ref.shape[1]             # W    * Cout (lane-dense conv/BN width)
    WoC = mw_ref.shape[1]               # Wout * Cout (lane-dense output width)
    Cout = bc_ref.shape[0]
    Cr = se2_ref.shape[0] - 1

    # ---- 3x3 conv (padding=1) + folded BN scale: ONE im2col matmul over all samples ----
    # lhs[r, dy*128 + l] = X[r+dy, l]; mconv holds the banded (Toeplitz-in-W) weights,
    # zero rows in the lane-padded positions.  Single bf16 cast, single MXU push, K=384.
    X = x_ref[...]                                                      # (Mb, 128) f32
    lhs = jnp.concatenate([X[0:Mv], X[1:Mv + 1], X[2:Mv + 2]],
                          axis=1).astype(jnp.bfloat16)                  # (Mv, 384)
    acc = jnp.dot(lhs, mconv_ref[...],
                  preferred_element_type=jnp.float32)                   # (Mv, WC)

    # ---- folded BN bias + ReLU (lane-dense) ----
    y = jnp.maximum(acc + vec_ref[:, :WC], 0.0).astype(jnp.bfloat16)    # (Mv, WC)

    # ---- bilinear upsample (align_corners=False), row pass.  wh is block-diagonal over
    #      the nb stacked samples and also selects the valid conv rows out of each slab.
    t1 = jnp.dot(wh_ref[...], y, preferred_element_type=jnp.float32)    # (Mout, WC)
    t1b = t1.astype(jnp.bfloat16)

    # ---- column pass -> u ; fused (sSE logits | per-row pooled channels) also from t1 ----
    u = jnp.dot(t1b, mw_ref[...], preferred_element_type=jnp.float32)   # (Mout, WoC)
    g = jnp.dot(t1b, gate2_ref[...], preferred_element_type=jnp.float32)  # (Mout, 384)
    q = g[:, :WoC]                                                      # sSE logits (pre-bias)
    gp = g[:, WoC:WoC + Cout].astype(jnp.bfloat16)                      # (Mout, Cout) pooled/scaled

    # ---- per-sample global average pool + SE squeeze/excite (kept in f32) ----
    z = jnp.dot(psum_ref[...], gp, preferred_element_type=jnp.float32)  # (nb, Cout)
    s1 = jnp.maximum(
        jnp.dot(z, se1_ref[:Cout, :], preferred_element_type=jnp.float32)
        + se1_ref[Cout:, :], 0.0)                                       # (nb, Cr)
    s2 = jax.nn.sigmoid(
        jnp.dot(s1, se2_ref[:Cr, :], preferred_element_type=jnp.float32)
        + se2_ref[Cr:, :])                                              # (nb, Cout)

    # ---- cSE gate: tile over Wout groups (bc) and broadcast over each sample's rows
    #      (psel); both are exact 0/1 kron matrices in bf16.
    gcs = jnp.dot(s2.astype(jnp.bfloat16), bc_ref[...],
                  preferred_element_type=jnp.float32)                   # (nb, WoC)
    gc = jnp.dot(psel_ref[...], gcs.astype(jnp.bfloat16),
                 preferred_element_type=jnp.float32)                    # (Mout, WoC)

    # ---- fused gating: out = u * (cSE + sigmoid(q + bsp))  (== cse + sse exactly) ----
    gate = gc + jax.nn.sigmoid(q + vec_ref[:, WC:])
    out_ref[...] = (u * gate).astype(out_ref.dtype)


# ------------------------------- wrapper --------------------------------------
def decoder_block_forward(x_nchw, kp):
    N, Cin, H, W = x_nchw.shape
    nb = kp["nb"]
    Hpad = kp["hpad"]
    WpCpad = kp["wpcpad"]
    assert N % nb == 0, "batch must be divisible by nb (samples per grid step)"

    WoC = kp["mw"].shape[1]
    Cout = kp["bc"].shape[0]
    Hout = kp["wh"].shape[0] // nb
    Wout = WoC // Cout
    WpC = (W + 2) * Cin
    G = N // nb

    # NCHW -> NHWC -> zero-pad (H,W) by 1 -> flatten (W,Cin) onto lanes -> pad rows to
    # Hpad and lanes to a 128 multiple -> stack the batch along the sublane/M axis.
    x = jnp.transpose(x_nchw, (0, 2, 3, 1))
    xp = jnp.pad(x, ((0, 0), (1, 1), (1, 1), (0, 0))).reshape(N, H + 2, WpC)
    xp = jnp.pad(xp, ((0, 0), (0, Hpad - (H + 2)), (0, WpCpad - WpC)))
    xflat = xp.reshape(N * Hpad, WpCpad)

    def rep(arr):  # weight replicated across the batch grid
        return pl.BlockSpec(arr.shape, lambda n, _z=(0,) * arr.ndim: _z)

    out2d = pl.pallas_call(
        _decoder_kernel,
        out_shape=jax.ShapeDtypeStruct((N * Hout, WoC), jnp.float32),
        grid_spec=pltpu.PrefetchScalarGridSpec(
            num_scalar_prefetch=0,
            grid=(G,),                       # >=2 parallel steps -> both v7x TCs used
            in_specs=[
                pl.BlockSpec((nb * Hpad, WpCpad), lambda n: (n, 0)),
                rep(kp["mconv"]), rep(kp["rowvec"]), rep(kp["wh"]), rep(kp["mw"]),
                rep(kp["gate2"]), rep(kp["psum"]), rep(kp["psel"]), rep(kp["bc"]),
                rep(kp["se1"]), rep(kp["se2"]),
            ],
            out_specs=pl.BlockSpec((nb * Hout, WoC), lambda n: (n, 0)),
        ),
        compiler_params=pltpu.CompilerParams(
            dimension_semantics=("parallel",),
            vmem_limit_bytes=32 * 1024 * 1024),
    )(xflat, kp["mconv"], kp["rowvec"], kp["wh"], kp["mw"], kp["gate2"],
      kp["psum"], kp["psel"], kp["bc"], kp["se1"], kp["se2"])

    # lane-dense (N*Hout, Wout*Cout) -> NCHW
    return jnp.transpose(out2d.reshape(N, Hout, Wout, Cout), (0, 3, 1, 2))


# --------------------------- glue / param setup --------------------------------
def bilinear_matrix(out_size, in_size):
    """(out,in) interpolation matrix for bilinear upsample, align_corners=False."""
    scale = in_size / out_size
    i = jnp.arange(out_size, dtype=jnp.float32)
    src = jnp.maximum((i + 0.5) * scale - 0.5, 0.0)
    i0 = jnp.minimum(jnp.floor(src).astype(jnp.int32), in_size - 1)
    i1 = jnp.minimum(i0 + 1, in_size - 1)
    lam = src - i0.astype(jnp.float32)
    return (jax.nn.one_hot(i0, in_size, dtype=jnp.float32) * (1.0 - lam)[:, None]
            + jax.nn.one_hot(i1, in_size, dtype=jnp.float32) * lam[:, None])


def init_params(key, in_ch, out_ch):
    """Raw module parameters (as the PyTorch module would hold them)."""
    ks = jax.random.split(key, 12)
    cr = max(out_ch // 2, 1)
    return {
        "wconv": 0.2 * jax.random.normal(ks[0], (3, 3, in_ch, out_ch), jnp.float32),  # HWIO
        "bconv": 0.1 * jax.random.normal(ks[1], (out_ch,), jnp.float32),
        "gamma": 1.0 + 0.1 * jax.random.normal(ks[2], (out_ch,), jnp.float32),
        "beta": 0.1 * jax.random.normal(ks[3], (out_ch,), jnp.float32),
        "rmean": 0.1 * jax.random.normal(ks[4], (out_ch,), jnp.float32),
        "rvar": 1.0 + 0.5 * jax.random.uniform(ks[5], (out_ch,), jnp.float32),
        "w1": 0.3 * jax.random.normal(ks[6], (out_ch, cr), jnp.float32),
        "b1": 0.1 * jax.random.normal(ks[7], (cr,), jnp.float32),
        "w2": 0.3 * jax.random.normal(ks[8], (cr, out_ch), jnp.float32),
        "b2": 0.1 * jax.random.normal(ks[9], (out_ch,), jnp.float32),
        "wsp": 0.3 * jax.random.normal(ks[10], (out_ch,), jnp.float32),
        "bsp": 0.1 * jax.random.normal(ks[11], (), jnp.float32),
    }


def prepare_kernel_params(mp, in_hw, size, nb):
    """Fold & repack module params into lane-dense kernel operands (host-side glue)."""
    Hin, Win = in_hw
    Hout, Wout = size
    wconv = mp["wconv"]
    Cin, Cout = wconv.shape[2], wconv.shape[3]

    Hp = Hin + 2
    Hpad = ((Hp + 7) // 8) * 8                      # per-sample slab height (sublane mult.)
    WpC = (Win + 2) * Cin
    WpCpad = ((WpC + 127) // 128) * 128             # per-tap lane width (128 multiple)
    WC = Win * Cout
    WoC = Wout * Cout
    GP = ((WoC + Cout + 127) // 128) * 128          # padded gate-matmul output width

    # eval-mode BN fold (+ conv bias)
    scale = mp["gamma"] / jnp.sqrt(mp["rvar"] + 1e-5)
    bias = mp["beta"] + scale * (mp["bconv"] - mp["rmean"])

    # 3x3 conv as ONE im2col matmul: K = 3*WpCpad banded (Toeplitz-in-W) matrix per tap,
    # BN scale folded in, zero rows in the lane-padded K positions.
    wsc = wconv * scale[None, None, None, :]
    dx = jnp.arange(Win + 2)[:, None] - jnp.arange(Win)[None, :]          # (Win+2, Win)
    valid = ((dx >= 0) & (dx <= 2)).astype(jnp.float32)
    m = wsc[:, jnp.clip(dx, 0, 2), :, :] * valid[None, :, :, None, None]  # (3,Win+2,Win,Cin,Cout)
    mconv = jnp.transpose(m, (0, 1, 3, 2, 4)).reshape(3, WpC, WC)
    mconv = jnp.pad(mconv, ((0, 0), (0, WpCpad - WpC), (0, 0))).reshape(3 * WpCpad, WC)

    # separable bilinear interpolation matrices (column pass as kron with I_Cout)
    wh = bilinear_matrix(Hout, Hin)                                       # (Hout, Hin)
    ww = bilinear_matrix(Wout, Win)                                       # (Wout, Win)
    eye_c = jnp.eye(Cout, dtype=jnp.float32)
    mw = jnp.kron(ww.T, eye_c)                                            # (WC, WoC)

    # row pass: block-diagonal over the nb samples stacked along M; its columns also pick
    # the valid conv rows (h < Hin) out of each sample's Hpad-row slab.
    wh_pad = jnp.pad(wh, ((0, 0), (0, Hpad - Hin)))                       # (Hout, Hpad)
    wh_big = jnp.kron(jnp.eye(nb, dtype=jnp.float32), wh_pad)[:, :nb * Hpad - 2]

    # scSE: spatial-gate matrix + mean-pool matrix, PRE-COMPOSED with the column pass so
    # the in-kernel gate matmul consumes t1 (K=WC) instead of u (K=WoC); padded to GP.
    wsp_mat = jnp.kron(jnp.eye(Wout, dtype=jnp.float32),
                       jnp.outer(mp["wsp"], jnp.ones((Cout,), jnp.float32)))     # (WoC,WoC)
    mpool = jnp.kron(jnp.ones((Wout, 1), jnp.float32), eye_c) / float(Hout * Wout)  # (WoC,Cout)
    gate2 = mw @ jnp.concatenate([wsp_mat, mpool], axis=1)                # (WC, WoC+Cout)
    gate2 = jnp.pad(gate2, ((0, 0), (0, GP - (WoC + Cout))))              # (WC, GP)

    # batch-fold helpers and cSE broadcast matrix (exact 0/1 kron matrices -> bf16 exact)
    psum = jnp.kron(jnp.eye(nb, dtype=jnp.float32), jnp.ones((1, Hout), jnp.float32))
    psel = jnp.kron(jnp.eye(nb, dtype=jnp.float32), jnp.ones((Hout, 1), jnp.float32))
    bc = jnp.kron(jnp.ones((1, Wout), jnp.float32), eye_c)                # (Cout, WoC)

    # packed per-channel row vector: [BN bias tiled over W | sSE bias broadcast]
    rowvec = jnp.concatenate(
        [jnp.tile(bias, Win)[None, :],
         jnp.full((1, WoC), mp["bsp"], jnp.float32)], axis=1)             # (1, WC+WoC)

    se1 = jnp.concatenate([mp["w1"], mp["b1"][None, :]], axis=0)          # (Cout+1, Cr)
    se2 = jnp.concatenate([mp["w2"], mp["b2"][None, :]], axis=0)          # (Cr+1, Cout)

    bf16 = jnp.bfloat16
    return {
        "nb": nb, "hpad": Hpad, "wpcpad": WpCpad,
        "mconv": mconv.astype(bf16),
        "rowvec": rowvec,
        "wh": wh_big.astype(bf16),
        "mw": mw.astype(bf16),
        "gate2": gate2.astype(bf16),
        "psum": psum.astype(bf16),
        "psel": psel.astype(bf16),
        "bc": bc.astype(bf16),
        "se1": se1,
        "se2": se2,
    }


def ref_forward(x_nchw, mp, size):
    """Pure-JAX f32 reference with identical math (eval-mode BN, standard scSE)."""
    x = jnp.transpose(x_nchw, (0, 2, 3, 1))
    y = lax.conv_general_dilated(x, mp["wconv"], (1, 1), ((1, 1), (1, 1)),
                                 dimension_numbers=('NHWC', 'HWIO', 'NHWC'))
    scale = mp["gamma"] / jnp.sqrt(mp["rvar"] + 1e-5)
    bias = mp["beta"] + scale * (mp["bconv"] - mp["rmean"])
    y = jnp.maximum(y * scale + bias, 0.0)
    wh = bilinear_matrix(size[0], x.shape[1])
    ww = bilinear_matrix(size[1], x.shape[2])
    u = jnp.einsum('oh,nhwc->nowc', wh, y)
    u = jnp.einsum('pw,nowc->nopc', ww, u)
    z = jnp.mean(u, axis=(1, 2))
    s = jax.nn.sigmoid(jnp.maximum(z @ mp["w1"] + mp["b1"], 0.0) @ mp["w2"] + mp["b2"])
    q = jax.nn.sigmoid(jnp.sum(u * mp["wsp"], axis=-1, keepdims=True) + mp["bsp"])
    return jnp.transpose(u * (s[:, None, None, :] + q), (0, 3, 1, 2))


if __name__ == "__main__":
    N, Cin, H, W = 4, 4, 16, 16
    Cout = 8
    size = (32, 32)
    nb = 2            # samples folded onto the matmul M axis per grid step -> grid=(2,)

    key = jax.random.PRNGKey(0)
    kx, kparam = jax.random.split(key)
    x = jax.random.normal(kx, (N, Cin, H, W), jnp.float32)
    mp = init_params(kparam, Cin, Cout)
    kp = prepare_kernel_params(mp, (H, W), size, nb=nb)

    out = jax.block_until_ready(decoder_block_forward(x, kp))
    assert out.shape == (N, Cout, size[0], size[1])

    ref = ref_forward(x, mp, size)
    # bf16 MXU operands (f32 accumulation) -> slightly looser tolerance than pure f32.
    assert bool(jnp.allclose(out, ref, atol=3e-2, rtol=3e-2)), \
        f"kernel/reference mismatch, max |err| = {jnp.max(jnp.abs(out - ref))}"
    print("KERNEL_OK")
</pallas_src>

<mosaic_0001>
module attributes {stable_mosaic.version = 11 : i64} {
  func.func @_decoder_kernel(%arg0: i32, %arg1: memref<48x128xf32, #tpu.memory_space<vmem>>, %arg2: memref<384x128xbf16, #tpu.memory_space<vmem>>, %arg3: memref<1x384xf32, #tpu.memory_space<vmem>>, %arg4: memref<64x46xbf16, #tpu.memory_space<vmem>>, %arg5: memref<128x256xbf16, #tpu.memory_space<vmem>>, %arg6: memref<128x384xbf16, #tpu.memory_space<vmem>>, %arg7: memref<2x64xbf16, #tpu.memory_space<vmem>>, %arg8: memref<64x2xbf16, #tpu.memory_space<vmem>>, %arg9: memref<8x256xbf16, #tpu.memory_space<vmem>>, %arg10: memref<9x4xf32, #tpu.memory_space<vmem>>, %arg11: memref<5x8xf32, #tpu.memory_space<vmem>>, %arg12: memref<64x256xf32, #tpu.memory_space<vmem>>) attributes {dimension_semantics = [#tpu.dimension_semantics<parallel>], iteration_bounds = array<i64: 2>, scalar_prefetch = 0 : i64, scratch_operands = 0 : i64, tpu.core_type = #tpu.core_type<tc>, window_params = [{transform_indices = @transform_0, window_bounds = array<i64: 48, 128>}, {pipeline_mode = #tpu.pipeline_mode<synchronous>, transform_indices = @transform_1, window_bounds = array<i64: 384, 128>}, {pipeline_mode = #tpu.pipeline_mode<synchronous>, transform_indices = @transform_2, window_bounds = array<i64: 1, 384>}, {pipeline_mode = #tpu.pipeline_mode<synchronous>, transform_indices = @transform_3, window_bounds = array<i64: 64, 46>}, {pipeline_mode = #tpu.pipeline_mode<synchronous>, transform_indices = @transform_4, window_bounds = array<i64: 128, 256>}, {pipeline_mode = #tpu.pipeline_mode<synchronous>, transform_indices = @transform_5, window_bounds = array<i64: 128, 384>}, {pipeline_mode = #tpu.pipeline_mode<synchronous>, transform_indices = @transform_6, window_bounds = array<i64: 2, 64>}, {pipeline_mode = #tpu.pipeline_mode<synchronous>, transform_indices = @transform_7, window_bounds = array<i64: 64, 2>}, {pipeline_mode = #tpu.pipeline_mode<synchronous>, transform_indices = @transform_8, window_bounds = array<i64: 8, 256>}, {pipeline_mode = #tpu.pipeline_mode<synchronous>, transform_indices = @transform_9, window_bounds = array<i64: 9, 4>}, {pipeline_mode = #tpu.pipeline_mode<synchronous>, transform_indices = @transform_10, window_bounds = array<i64: 5, 8>}, {transform_indices = @transform_11, window_bounds = array<i64: 64, 256>}]} {
    %c0 = arith.constant 0 : index
    %c0_0 = arith.constant 0 : index
    %0 = vector.load %arg1[%c0, %c0_0] : memref<48x128xf32, #tpu.memory_space<vmem>>, vector<48x128xf32>
    %1 = vector.extract_strided_slice %0 {offsets = [0, 0], sizes = [46, 128], strides = [1, 1]} : vector<48x128xf32> to vector<46x128xf32>
    %2 = vector.extract_strided_slice %0 {offsets = [1, 0], sizes = [46, 128], strides = [1, 1]} : vector<48x128xf32> to vector<46x128xf32>
    %3 = vector.extract_strided_slice %0 {offsets = [2, 0], sizes = [46, 128], strides = [1, 1]} : vector<48x128xf32> to vector<46x128xf32>
    %4 = tpu.concatenate %1, %2, %3 in 1 : vector<46x128xf32>, vector<46x128xf32>, vector<46x128xf32> -> vector<46x384xf32>
    %5 = arith.truncf %4 : vector<46x384xf32> to vector<46x384xbf16>
    %c0_1 = arith.constant 0 : index
    %c0_2 = arith.constant 0 : index
    %6 = vector.load %arg2[%c0_1, %c0_2] : memref<384x128xbf16, #tpu.memory_space<vmem>>, vector<384x128xbf16>
    %cst = arith.constant dense<0.000000e+00> : vector<46x128xf32>
    %7 = tpu.matmul %5, %6, %cst {dimension_numbers = #tpu.dot_dimension_numbers<[1], [0], [0], [1], [0, 0, 1, 1], [], []>} : vector<46x384xbf16>, vector<384x128xbf16>, vector<46x128xf32> -> vector<46x128xf32>
    %c0_3 = arith.constant 0 : index
    %c0_4 = arith.constant 0 : index
    %8 = vector.load %arg3[%c0_3, %c0_4] : memref<1x384xf32, #tpu.memory_space<vmem>>, vector<1x128xf32>
    %9 = vector.broadcast %8 : vector<1x128xf32> to vector<46x128xf32>
    %10 = arith.addf %7, %9 : vector<46x128xf32>
    %cst_5 = arith.constant 0.000000e+00 : f32
    %11 = vector.broadcast %cst_5 : f32 to vector<46x128xf32>
    %12 = arith.maximumf %10, %11 : vector<46x128xf32>
    %13 = arith.truncf %12 : vector<46x128xf32> to vector<46x128xbf16>
    %c0_6 = arith.constant 0 : index
    %c0_7 = arith.constant 0 : index
    %14 = vector.load %arg4[%c0_6, %c0_7] : memref<64x46xbf16, #tpu.memory_space<vmem>>, vector<64x46xbf16>
    %cst_8 = arith.constant dense<0.000000e+00> : vector<64x128xf32>
    %15 = tpu.matmul %14, %13, %cst_8 {dimension_numbers = #tpu.dot_dimension_numbers<[1], [0], [0], [1], [0, 0, 1, 1], [], []>} : vector<64x46xbf16>, vector<46x128xbf16>, vector<64x128xf32> -> vector<64x128xf32>
    %16 = arith.truncf %15 : vector<64x128xf32> to vector<64x128xbf16>
    %c0_9 = arith.constant 0 : index
    %c0_10 = arith.constant 0 : index
    %17 = vector.load %arg5[%c0_9, %c0_10] : memref<128x256xbf16, #tpu.memory_space<vmem>>, vector<128x256xbf16>
    %cst_11 = arith.constant dense<0.000000e+00> : vector<64x256xf32>
    %18 = tpu.matmul %16, %17, %cst_11 {dimension_numbers = #tpu.dot_dimension_numbers<[1], [0], [0], [1], [0, 0, 1, 1], [], []>} : vector<64x128xbf16>, vector<128x256xbf16>, vector<64x256xf32> -> vector<64x256xf32>
    %c0_12 = arith.constant 0 : index
    %c0_13 = arith.constant 0 : index
    %19 = vector.load %arg6[%c0_12, %c0_13] : memref<128x384xbf16, #tpu.memory_space<vmem>>, vector<128x384xbf16>
    %cst_14 = arith.constant dense<0.000000e+00> : vector<64x384xf32>
    %20 = tpu.matmul %16, %19, %cst_14 {dimension_numbers = #tpu.dot_dimension_numbers<[1], [0], [0], [1], [0, 0, 1, 1], [], []>} : vector<64x128xbf16>, vector<128x384xbf16>, vector<64x384xf32> -> vector<64x384xf32>
    %21 = vector.extract_strided_slice %20 {offsets = [0, 0], sizes = [64, 256], strides = [1, 1]} : vector<64x384xf32> to vector<64x256xf32>
    %22 = vector.extract_strided_slice %20 {offsets = [0, 256], sizes = [64, 8], strides = [1, 1]} : vector<64x384xf32> to vector<64x8xf32>
    %23 = arith.truncf %22 : vector<64x8xf32> to vector<64x8xbf16>
    %c0_15 = arith.constant 0 : index
    %c0_16 = arith.constant 0 : index
    %24 = vector.load %arg7[%c0_15, %c0_16] : memref<2x64xbf16, #tpu.memory_space<vmem>>, vector<2x64xbf16>
    %cst_17 = arith.constant dense<0.000000e+00> : vector<2x8xf32>
    %25 = tpu.matmul %24, %23, %cst_17 {dimension_numbers = #tpu.dot_dimension_numbers<[1], [0], [0], [1], [0, 0, 1, 1], [], []>} : vector<2x64xbf16>, vector<64x8xbf16>, vector<2x8xf32> -> vector<2x8xf32>
    %c0_18 = arith.constant 0 : index
    %c0_19 = arith.constant 0 : index
    %26 = vector.load %arg10[%c0_18, %c0_19] : memref<9x4xf32, #tpu.memory_space<vmem>>, vector<8x4xf32>
    %cst_20 = arith.constant dense<0.000000e+00> : vector<2x4xf32>
    %27 = tpu.matmul %25, %26, %cst_20 {dimension_numbers = #tpu.dot_dimension_numbers<[1], [0], [0], [1], [0, 0, 1, 1], [], []>} : vector<2x8xf32>, vector<8x4xf32>, vector<2x4xf32> -> vector<2x4xf32>
    %c8 = arith.constant 8 : index
    %c0_21 = arith.constant 0 : index
    %28 = vector.load %arg10[%c8, %c0_21] : memref<9x4xf32, #tpu.memory_space<vmem>>, vector<1x4xf32>
    %29 = vector.broadcast %28 : vector<1x4xf32> to vector<2x4xf32>
    %30 = arith.addf %27, %29 : vector<2x4xf32>
    %cst_22 = arith.constant 0.000000e+00 : f32
    %31 = vector.broadcast %cst_22 : f32 to vector<2x4xf32>
    %32 = arith.maximumf %30, %31 : vector<2x4xf32>
    %c0_23 = arith.constant 0 : index
    %c0_24 = arith.constant 0 : index
    %33 = vector.load %arg11[%c0_23, %c0_24] : memref<5x8xf32, #tpu.memory_space<vmem>>, vector<4x8xf32>
    %cst_25 = arith.constant dense<0.000000e+00> : vector<2x8xf32>
    %34 = tpu.matmul %32, %33, %cst_25 {dimension_numbers = #tpu.dot_dimension_numbers<[1], [0], [0], [1], [0, 0, 1, 1], [], []>} : vector<2x4xf32>, vector<4x8xf32>, vector<2x8xf32> -> vector<2x8xf32>
    %c4 = arith.constant 4 : index
    %c0_26 = arith.constant 0 : index
    %35 = vector.load %arg11[%c4, %c0_26] : memref<5x8xf32, #tpu.memory_space<vmem>>, vector<1x8xf32>
    %36 = vector.broadcast %35 : vector<1x8xf32> to vector<2x8xf32>
    %37 = arith.addf %34, %36 : vector<2x8xf32>
    %38 = arith.negf %37 : vector<2x8xf32>
    %39 = math.exp %38 : vector<2x8xf32>
    %cst_27 = arith.constant 1.000000e+00 : f32
    %40 = vector.broadcast %cst_27 : f32 to vector<2x8xf32>
    %41 = arith.addf %40, %39 : vector<2x8xf32>
    %42 = arith.divf %40, %41 : vector<2x8xf32>
    %43 = arith.truncf %42 : vector<2x8xf32> to vector<2x8xbf16>
    %c0_28 = arith.constant 0 : index
    %c0_29 = arith.constant 0 : index
    %44 = vector.load %arg9[%c0_28, %c0_29] : memref<8x256xbf16, #tpu.memory_space<vmem>>, vector<8x256xbf16>
    %cst_30 = arith.constant dense<0.000000e+00> : vector<2x256xf32>
    %45 = tpu.matmul %43, %44, %cst_30 {dimension_numbers = #tpu.dot_dimension_numbers<[1], [0], [0], [1], [0, 0, 1, 1], [], []>} : vector<2x8xbf16>, vector<8x256xbf16>, vector<2x256xf32> -> vector<2x256xf32>
    %c0_31 = arith.constant 0 : index
    %c0_32 = arith.constant 0 : index
    %46 = vector.load %arg8[%c0_31, %c0_32] : memref<64x2xbf16, #tpu.memory_space<vmem>>, vector<64x2xbf16>
    %47 = arith.truncf %45 : vector<2x256xf32> to vector<2x256xbf16>
    %cst_33 = arith.constant dense<0.000000e+00> : vector<64x256xf32>
    %48 = tpu.matmul %46, %47, %cst_33 {dimension_numbers = #tpu.dot_dimension_numbers<[1], [0], [0], [1], [0, 0, 1, 1], [], []>} : vector<64x2xbf16>, vector<2x256xbf16>, vector<64x256xf32> -> vector<64x256xf32>
    %c0_34 = arith.constant 0 : index
    %c128 = arith.constant 128 : index
    %49 = vector.load %arg3[%c0_34, %c128] : memref<1x384xf32, #tpu.memory_space<vmem>>, vector<1x256xf32>
    %50 = vector.broadcast %49 : vector<1x256xf32> to vector<64x256xf32>
    %51 = arith.addf %21, %50 : vector<64x256xf32>
    %52 = arith.negf %51 : vector<64x256xf32>
    %53 = math.exp %52 : vector<64x256xf32>
    %cst_35 = arith.constant 1.000000e+00 : f32
    %54 = vector.broadcast %cst_35 : f32 to vector<64x256xf32>
    %55 = arith.addf %54, %53 : vector<64x256xf32>
    %56 = arith.divf %54, %55 : vector<64x256xf32>
    %57 = arith.addf %48, %56 : vector<64x256xf32>
    %58 = arith.mulf %18, %57 : vector<64x256xf32>
    %c0_36 = arith.constant 0 : index
    %c0_37 = arith.constant 0 : index
    %59 = vector.load %arg12[%c0_36, %c0_37] : memref<64x256xf32, #tpu.memory_space<vmem>>, vector<64x256xf32>
    tpu.vector_store %arg12[%c0_36, %c0_37], %58 {strides = array<i32>} : memref<64x256xf32, #tpu.memory_space<vmem>>, vector<64x256xf32>,
    return
  }
  func.func @transform_0(%arg0: i32) -> (i32, i32) {
    %c0_i32 = arith.constant 0 : i32
    %c0_i32_0 = arith.constant 0 : i32
    return %arg0, %c0_i32 : i32, i32
  }
  func.func @transform_1(%arg0: i32) -> (i32, i32) {
    %c0_i32 = arith.constant 0 : i32
    %c0_i32_0 = arith.constant 0 : i32
    %c0_i32_1 = arith.constant 0 : i32
    return %c0_i32, %c0_i32_0 : i32, i32
  }
  func.func @transform_2(%arg0: i32) -> (i32, i32) {
    %c0_i32 = arith.constant 0 : i32
    %c0_i32_0 = arith.constant 0 : i32
    %c0_i32_1 = arith.constant 0 : i32
    return %c0_i32, %c0_i32_0 : i32, i32
  }
  func.func @transform_3(%arg0: i32) -> (i32, i32) {
    %c0_i32 = arith.constant 0 : i32
    %c0_i32_0 = arith.constant 0 : i32
    %c0_i32_1 = arith.constant 0 : i32
    return %c0_i32, %c0_i32_0 : i32, i32
  }
  func.func @transform_4(%arg0: i32) -> (i32, i32) {
    %c0_i32 = arith.constant 0 : i32
    %c0_i32_0 = arith.constant 0 : i32
    %c0_i32_1 = arith.constant 0 : i32
    return %c0_i32, %c0_i32_0 : i32, i32
  }
  func.func @transform_5(%arg0: i32) -> (i32, i32) {
    %c0_i32 = arith.constant 0 : i32
    %c0_i32_0 = arith.constant 0 : i32
    %c0_i32_1 = arith.constant 0 : i32
    return %c0_i32, %c0_i32_0 : i32, i32
  }
  func.func @transform_6(%arg0: i32) -> (i32, i32) {
    %c0_i32 = arith.constant 0 : i32
    %c0_i32_0 = arith.constant 0 : i32
    %c0_i32_1 = arith.constant 0 : i32
    return %c0_i32, %c0_i32_0 : i32, i32
  }
  func.func @transform_7(%arg0: i32) -> (i32, i32) {
    %c0_i32 = arith.constant 0 : i32
    %c0_i32_0 = arith.constant 0 : i32
    %c0_i32_1 = arith.constant 0 : i32
    return %c0_i32, %c0_i32_0 : i32, i32
  }
  func.func @transform_8(%arg0: i32) -> (i32, i32) {
    %c0_i32 = arith.constant 0 : i32
    %c0_i32_0 = arith.constant 0 : i32
    %c0_i32_1 = arith.constant 0 : i32
    return %c0_i32, %c0_i32_0 : i32, i32
  }
  func.func @transform_9(%arg0: i32) -> (i32, i32) {
    %c0_i32 = arith.constant 0 : i32
    %c0_i32_0 = arith.constant 0 : i32
    %c0_i32_1 = arith.constant 0 : i32
    return %c0_i32, %c0_i32_0 : i32, i32
  }
  func.func @transform_10(%arg0: i32) -> (i32, i32) {
    %c0_i32 = arith.constant 0 : i32
    %c0_i32_0 = arith.constant 0 : i32
    %c0_i32_1 = arith.constant 0 : i32
    return %c0_i32, %c0_i32_0 : i32, i32
  }
  func.func @transform_11(%arg0: i32) -> (i32, i32) {
    %c0_i32 = arith.constant 0 : i32
    %c0_i32_0 = arith.constant 0 : i32
    return %arg0, %c0_i32 : i32, i32
  }
}

</mosaic_0001>

<llo_original>
// kernel: tpu_custom_call.1
$region0: #{tpu_custom_call.1}
  #allocation0 [shape = 'u32[]', space=smem, size = 0x4, offset = 0x4, fixed_abs, tag = 'smem constant byte address 0x4 - core index']
  #allocation1 [shape = 'u32[72,128]{1,0:T(1,128)}', space=vmem, size = 0x9000, scoped, tag = 'internal scratch']
  %s0 = inlined_call_operand.hbm [shape: f32[96,128], index: 0, kind: input, shape index: {}]
  %s1 = inlined_call_operand.hbm [shape: bf16[384,128], index: 1, kind: input, shape index: {}]
  %s2 = inlined_call_operand.vmem [shape: f32[1,384], index: 2, kind: input, shape index: {}]
  %s3 = inlined_call_operand.vmem [shape: bf16[64,46], index: 3, kind: input, shape index: {}]
  %s4 = inlined_call_operand.hbm [shape: bf16[128,256], index: 4, kind: input, shape index: {}]
  %s5 = inlined_call_operand.hbm [shape: bf16[128,384], index: 5, kind: input, shape index: {}]
  %s6 = inlined_call_operand.vmem [shape: bf16[2,64], index: 6, kind: input, shape index: {}]
  %s7 = inlined_call_operand.vmem [shape: bf16[64,2], index: 7, kind: input, shape index: {}]
  %s8 = inlined_call_operand.vmem [shape: bf16[8,256], index: 8, kind: input, shape index: {}]
  %s9 = inlined_call_operand.vmem [shape: f32[9,4], index: 9, kind: input, shape index: {}]
  %s10 = inlined_call_operand.vmem [shape: f32[5,8], index: 10, kind: input, shape index: {}]
  %s11 = inlined_call_operand.hbm [shape: f32[128,256], index: 11, kind: output, shape index: {}]
  %s12 = sld [smem:[#allocation0]]
  $region93: #{tpu_custom_call.1} parent=0
    _
  %s14 = ssub.s32 1, %s12
  %s15 = scalar_select 0, %s14, %s12
  $region1: #{tpu_custom_call.1} parent=0
    #allocation2 [shape = 'u8[49152]{0}', space=vmem, size = 0xc000, scoped, tag = 'input window, operand 0']
    #allocation3 [shape = 's32[2]{0}', space=sflag, size = 0x8, scoped, tag = 'scoped memory for tpu_custom_call.1']
    #allocation4 [shape = 's32[2]{0}', space=sflag, size = 0x8, scoped, tag = 'scoped memory for tpu_custom_call.1']
    #allocation5 [shape = 'u8[98304]{0}', space=vmem, size = 0x18000, scoped, tag = 'input window, operand 1, single buffered']
    #allocation6 [shape = 's32[1]{0}', space=sflag, size = 0x4, scoped, tag = 'scoped memory for tpu_custom_call.1']
    #allocation7 [shape = 'u8[65536]{0}', space=vmem, size = 0x10000, scoped, tag = 'input window, operand 4, single buffered']
    #allocation8 [shape = 'u8[98304]{0}', space=vmem, size = 0x18000, scoped, tag = 'input window, operand 5, single buffered']
    #allocation9 [shape = 's32[1]{0}', space=sflag, size = 0x4, scoped, tag = 'scoped memory for tpu_custom_call.1']
    #allocation10 [shape = 'u8[131072]{0}', space=vmem, size = 0x20000, scoped, tag = 'output window, operand 0']
    %16 = vsyncpa [#allocation3], 0
    %s17 = scalar_lea.sflag [#allocation3], 1
    %18 = vsyncpa %s17, 0
    %19 = vsyncpa [#allocation6], 0
    %20 = vsyncpa [#allocation9], 0
    %21 = vsyncpa [#allocation4], 0
    %s22 = scalar_lea.sflag [#allocation4], 1
    %23 = vsyncpa %s22, 0
    loop: start=0, step=1, limit=4
    $region2: #{tpu_custom_call.1} parent=1 // loop_pre_header
      _
    $region3: #{tpu_custom_call.1} parent=1 // loop_header
      %s25 = sphi 0, %s29
      %p26 = scmp.ge.s32.totalorder %s25, 4
      %s35 = sphi 0, %s37
      %s38 = sphi 0, %s35
      %s39 = sphi 0, %s38
      %s55 = sphi 0, %s39
      %s59 = sphi 0, %s59
      %s61 = sphi 0, %s59
      %s62 = sphi 0, %s61
      %s76 = sphi 0, %s62
      %s80 = sphi 0, %s80
      %s82 = sphi 0, %s80
      %s83 = sphi 0, %s82
      %s97 = sphi 0, %s83
      %s101 = sphi 0, %s101
      %s103 = sphi 0, %s101
      %s104 = sphi 0, %s103
      %s118 = sphi 0, %s104
      %s122 = sphi 0, %s122
      %s124 = sphi 0, %s122
      %s125 = sphi 0, %s124
      %s139 = sphi 0, %s125
      %s143 = sphi 0, %s143
      %s145 = sphi 0, %s143
      %s146 = sphi 0, %s145
      %s160 = sphi 0, %s146
      %s164 = sphi 0, %s164
      %s166 = sphi 0, %s164
      %s167 = sphi 0, %s166
      %s181 = sphi 0, %s167
      %s185 = sphi 0, %s185
      %s187 = sphi 0, %s185
      %s188 = sphi 0, %s187
      %s202 = sphi 0, %s188
      %s206 = sphi 0, %s206
      %s208 = sphi 0, %s206
      %s209 = sphi 0, %s208
      %s223 = sphi 0, %s209
      %s227 = sphi 0, %s227
      %s229 = sphi 0, %s227
      %s230 = sphi 0, %s229
      %s244 = sphi 0, %s230
      %s248 = sphi 0, %s248
      %s250 = sphi 0, %s248
      %s251 = sphi 0, %s250
      %s265 = sphi 0, %s251
      %s271 = sphi 0, %s273
      %s274 = sphi 0, %s271
      %s275 = sphi 0, %s274
      %s291 = sphi 0, %s275
    $region4: #{tpu_custom_call.1} parent=1 // loop_header_branch
      %28 = sbr.rel (%p26) target = $region8
    $region5: #{tpu_custom_call.1} parent=1 // loop_body
      %s30 = ssub.s32 %s25, 1
      %s31 = ssub.s32 %s25, 2
      %s32 = sadd.s32 %s25, 1
      %s33 = ssub.s32 %s25, %s32
      %p34 = scmp.eq.s32.totalorder %s33, 0
      %s36 = sadd.s32 %s35, 1
      %s37 = scalar_select %p34, %s35, %s36
      %p40 = pneg %p34
      %p41 = scmp.eq.s32.totalorder %s25, 1
      %p42 = por %p40, %p41
      %p43 = scmp.ne.s32.totalorder %s35, %s38
      %p44 = scmp.eq.s32.totalorder %s25, 0
      %p45 = por %p43, %p44
      %p46 = scmp.ne.s32.totalorder %s35, %s38
      %p47 = scmp.eq.s32.totalorder %s30, 1
      %p48 = por %p46, %p47
      %p49 = scmp.ne.s32.totalorder %s38, %s39
      %p50 = scmp.eq.s32.totalorder %s30, 0
      %p51 = por %p49, %p50
      %p52 = scmp.ne.s32.totalorder %s38, %s39
      %p53 = scmp.eq.s32.totalorder %s31, 1
      %p54 = por %p52, %p53
      %p56 = scmp.ne.s32.totalorder %s39, %s55
      %p57 = scmp.eq.s32.totalorder %s31, 0
      %p58 = por %p56, %p57
      %s60 = sadd.s32 %s59, 1
      %p63 = scmp.eq.s32.totalorder %s25, 1
      %p64 = scmp.ne.s32.totalorder %s59, %s61
      %p65 = scmp.eq.s32.totalorder %s25, 0
      %p66 = por %p64, %p65
      %p67 = scmp.ne.s32.totalorder %s59, %s61
      %p68 = scmp.eq.s32.totalorder %s30, 1
      %p69 = por %p67, %p68
      %p70 = scmp.ne.s32.totalorder %s61, %s62
      %p71 = scmp.eq.s32.totalorder %s30, 0
      %p72 = por %p70, %p71
      %p73 = scmp.ne.s32.totalorder %s61, %s62
      %p74 = scmp.eq.s32.totalorder %s31, 1
      %p75 = por %p73, %p74
      %p77 = scmp.ne.s32.totalorder %s62, %s76
      %p78 = scmp.eq.s32.totalorder %s31, 0
      %p79 = por %p77, %p78
      %s81 = sadd.s32 %s80, 1
      %p84 = scmp.eq.s32.totalorder %s25, 1
      %p85 = scmp.ne.s32.totalorder %s80, %s82
      %p86 = scmp.eq.s32.totalorder %s25, 0
      %p87 = por %p85, %p86
      %p88 = scmp.ne.s32.totalorder %s80, %s82
      %p89 = scmp.eq.s32.totalorder %s30, 1
      %p90 = por %p88, %p89
      %p91 = scmp.ne.s32.totalorder %s82, %s83
      %p92 = scmp.eq.s32.totalorder %s30, 0
      %p93 = por %p91, %p92
      %p94 = scmp.ne.s32.totalorder %s82, %s83
      %p95 = scmp.eq.s32.totalorder %s31, 1
      %p96 = por %p94, %p95
      %p98 = scmp.ne.s32.totalorder %s83, %s97
      %p99 = scmp.eq.s32.totalorder %s31, 0
      %p100 = por %p98, %p99
      %s102 = sadd.s32 %s101, 1
      %p105 = scmp.eq.s32.totalorder %s25, 1
      %p106 = scmp.ne.s32.totalorder %s101, %s103
      %p107 = scmp.eq.s32.totalorder %s25, 0
      %p108 = por %p106, %p107
      %p109 = scmp.ne.s32.totalorder %s101, %s103
      %p110 = scmp.eq.s32.totalorder %s30, 1
      %p111 = por %p109, %p110
      %p112 = scmp.ne.s32.totalorder %s103, %s104
      %p113 = scmp.eq.s32.totalorder %s30, 0
      %p114 = por %p112, %p113
      %p115 = scmp.ne.s32.totalorder %s103, %s104
      %p116 = scmp.eq.s32.totalorder %s31, 1
      %p117 = por %p115, %p116
      %p119 = scmp.ne.s32.totalorder %s104, %s118
      %p120 = scmp.eq.s32.totalorder %s31, 0
      %p121 = por %p119, %p120
      %s123 = sadd.s32 %s122, 1
      %p126 = scmp.eq.s32.totalorder %s25, 1
      %p127 = scmp.ne.s32.totalorder %s122, %s124
      %p128 = scmp.eq.s32.totalorder %s25, 0
      %p129 = por %p127, %p128
      %p130 = scmp.ne.s32.totalorder %s122, %s124
      %p131 = scmp.eq.s32.totalorder %s30, 1
      %p132 = por %p130, %p131
      %p133 = scmp.ne.s32.totalorder %s124, %s125
      %p134 = scmp.eq.s32.totalorder %s30, 0
      %p135 = por %p133, %p134
      %p136 = scmp.ne.s32.totalorder %s124, %s125
      %p137 = scmp.eq.s32.totalorder %s31, 1
      %p138 = por %p136, %p137
      %p140 = scmp.ne.s32.totalorder %s125, %s139
      %p141 = scmp.eq.s32.totalorder %s31, 0
      %p142 = por %p140, %p141
      %s144 = sadd.s32 %s143, 1
      %p147 = scmp.eq.s32.totalorder %s25, 1
      %p148 = scmp.ne.s32.totalorder %s143, %s145
      %p149 = scmp.eq.s32.totalorder %s25, 0
      %p150 = por %p148, %p149
      %p151 = scmp.ne.s32.totalorder %s143, %s145
      %p152 = scmp.eq.s32.totalorder %s30, 1
      %p153 = por %p151, %p152
      %p154 = scmp.ne.s32.totalorder %s145, %s146
      %p155 = scmp.eq.s32.totalorder %s30, 0
      %p156 = por %p154, %p155
      %p157 = scmp.ne.s32.totalorder %s145, %s146
      %p158 = scmp.eq.s32.totalorder %s31, 1
      %p159 = por %p157, %p158
      %p161 = scmp.ne.s32.totalorder %s146, %s160
      %p162 = scmp.eq.s32.totalorder %s31, 0
      %p163 = por %p161, %p162
      %s165 = sadd.s32 %s164, 1
      %p168 = scmp.eq.s32.totalorder %s25, 1
      %p169 = scmp.ne.s32.totalorder %s164, %s166
      %p170 = scmp.eq.s32.totalorder %s25, 0
      %p171 = por %p169, %p170
      %p172 = scmp.ne.s32.totalorder %s164, %s166
      %p173 = scmp.eq.s32.totalorder %s30, 1
      %p174 = por %p172, %p173
      %p175 = scmp.ne.s32.totalorder %s166, %s167
      %p176 = scmp.eq.s32.totalorder %s30, 0
      %p177 = por %p175, %p176
      %p178 = scmp.ne.s32.totalorder %s166, %s167
      %p179 = scmp.eq.s32.totalorder %s31, 1
      %p180 = por %p178, %p179
      %p182 = scmp.ne.s32.totalorder %s167, %s181
      %p183 = scmp.eq.s32.totalorder %s31, 0
      %p184 = por %p182, %p183
      %s186 = sadd.s32 %s185, 1
      %p189 = scmp.eq.s32.totalorder %s25, 1
      %p190 = scmp.ne.s32.totalorder %s185, %s187
      %p191 = scmp.eq.s32.totalorder %s25, 0
      %p192 = por %p190, %p191
      %p193 = scmp.ne.s32.totalorder %s185, %s187
      %p194 = scmp.eq.s32.totalorder %s30, 1
      %p195 = por %p193, %p194
      %p196 = scmp.ne.s32.totalorder %s187, %s188
      %p197 = scmp.eq.s32.totalorder %s30, 0
      %p198 = por %p196, %p197
      %p199 = scmp.ne.s32.totalorder %s187, %s188
      %p200 = scmp.eq.s32.totalorder %s31, 1
      %p201 = por %p199, %p200
      %p203 = scmp.ne.s32.totalorder %s188, %s202
      %p204 = scmp.eq.s32.totalorder %s31, 0
      %p205 = por %p203, %p204
      %s207 = sadd.s32 %s206, 1
      %p210 = scmp.eq.s32.totalorder %s25, 1
      %p211 = scmp.ne.s32.totalorder %s206, %s208
      %p212 = scmp.eq.s32.totalorder %s25, 0
      %p213 = por %p211, %p212
      %p214 = scmp.ne.s32.totalorder %s206, %s208
      %p215 = scmp.eq.s32.totalorder %s30, 1
      %p216 = por %p214, %p215
      %p217 = scmp.ne.s32.totalorder %s208, %s209
      %p218 = scmp.eq.s32.totalorder %s30, 0
      %p219 = por %p217, %p218
      %p220 = scmp.ne.s32.totalorder %s208, %s209
      %p221 = scmp.eq.s32.totalorder %s31, 1
      %p222 = por %p220, %p221
      %p224 = scmp.ne.s32.totalorder %s209, %s223
      %p225 = scmp.eq.s32.totalorder %s31, 0
      %p226 = por %p224, %p225
      %s228 = sadd.s32 %s227, 1
      %p231 = scmp.eq.s32.totalorder %s25, 1
      %p232 = scmp.ne.s32.totalorder %s227, %s229
      %p233 = scmp.eq.s32.totalorder %s25, 0
      %p234 = por %p232, %p233
      %p235 = scmp.ne.s32.totalorder %s227, %s229
      %p236 = scmp.eq.s32.totalorder %s30, 1
      %p237 = por %p235, %p236
      %p238 = scmp.ne.s32.totalorder %s229, %s230
      %p239 = scmp.eq.s32.totalorder %s30, 0
      %p240 = por %p238, %p239
      %p241 = scmp.ne.s32.totalorder %s229, %s230
      %p242 = scmp.eq.s32.totalorder %s31, 1
      %p243 = por %p241, %p242
      %p245 = scmp.ne.s32.totalorder %s230, %s244
      %p246 = scmp.eq.s32.totalorder %s31, 0
      %p247 = por %p245, %p246
      %s249 = sadd.s32 %s248, 1
      %p252 = scmp.eq.s32.totalorder %s25, 1
      %p253 = scmp.ne.s32.totalorder %s248, %s250
      %p254 = scmp.eq.s32.totalorder %s25, 0
      %p255 = por %p253, %p254
      %p256 = scmp.ne.s32.totalorder %s248, %s250
      %p257 = scmp.eq.s32.totalorder %s30, 1
      %p258 = por %p256, %p257
      %p259 = scmp.ne.s32.totalorder %s250, %s251
      %p260 = scmp.eq.s32.totalorder %s30, 0
      %p261 = por %p259, %p260
      %p262 = scmp.ne.s32.totalorder %s250, %s251
      %p263 = scmp.eq.s32.totalorder %s31, 1
      %p264 = por %p262, %p263
      %p266 = scmp.ne.s32.totalorder %s251, %s265
      %p267 = scmp.eq.s32.totalorder %s31, 0
      %p268 = por %p266, %p267
      %s269 = ssub.s32 %s25, %s32
      %p270 = scmp.eq.s32.totalorder %s269, 0
      %s272 = sadd.s32 %s271, 1
      %s273 = scalar_select %p270, %s271, %s272
      %p276 = pneg %p270
      %p277 = scmp.eq.s32.totalorder %s25, 1
      %p278 = por %p276, %p277
      %p279 = scmp.ne.s32.totalorder %s271, %s274
      %p280 = scmp.eq.s32.totalorder %s25, 0
      %p281 = por %p279, %p280
      %p282 = scmp.ne.s32.totalorder %s271, %s274
      %p283 = scmp.eq.s32.totalorder %s30, 1
      %p284 = por %p282, %p283
      %p285 = scmp.ne.s32.totalorder %s274, %s275
      %p286 = scmp.eq.s32.totalorder %s30, 0
      %p287 = por %p285, %p286
      %p288 = scmp.ne.s32.totalorder %s274, %s275
      %p289 = scmp.eq.s32.totalorder %s31, 1
      %p290 = por %p288, %p289
      %p292 = scmp.ne.s32.totalorder %s275, %s291
      %p293 = scmp.eq.s32.totalorder %s31, 0
      %p294 = por %p292, %p293
      %p295 = scmp.le.s32.totalorder 1, %s25
      %p296 = scmp.lt.s32.totalorder %s25, 3
      %p297 = pnand %p295, %p296
      %p298 = pneg %p297
      // Predicated region
      $region9: #{tpu_custom_call.1} parent=5 // pred_check
        _
      $region10: #{tpu_custom_call.1} parent=5 // pred_check_branch
        %300 = sbr.rel (%p297) target = $region12
      $region11: #{tpu_custom_call.1} parent=5 // pred_region
        %s301 = ssub.s32 %s25, 1
        // Predicated region
        $region13: #{tpu_custom_call.1} parent=11 // pred_check
          %p302 = pneg %p72
        $region14: #{tpu_custom_call.1} parent=11 // pred_check_branch
          %304 = sbr.rel (%p302) target = $region16
        $region15: #{tpu_custom_call.1} parent=11 // pred_region
          %306 = vsyncadd [#allocation6], 0
          %s307 = sshll.u32 %s1, 4
          %s308 = int_to_ptr.hbm [resolvable:$true] %s307
          %s309 = sshll.u32 [#allocation5], 4
          %s310 = int_to_ptr.vmem [resolvable:$true] %s309
          %315 = dma.hbm_to_vmem [thread:$0]  %s308, 3072, %s310, [#allocation6], 64, 64, 4
        $region16: #{tpu_custom_call.1} parent=11 // pred_fallthru
          _
        // Predicated region
        $region17: #{tpu_custom_call.1} parent=11 // pred_check
          %p316 = pneg %p93
        $region18: #{tpu_custom_call.1} parent=11 // pred_check_branch
          %318 = sbr.rel (%p316) target = $region20
        $region19: #{tpu_custom_call.1} parent=11 // pred_region
          _
        $region20: #{tpu_custom_call.1} parent=11 // pred_fallthru
          _
        // Predicated region
        $region21: #{tpu_custom_call.1} parent=11 // pred_check
          %p319 = pneg %p114
        $region22: #{tpu_custom_call.1} parent=11 // pred_check_branch
          %321 = sbr.rel (%p319) target = $region24
        $region23: #{tpu_custom_call.1} parent=11 // pred_region
          _
        $region24: #{tpu_custom_call.1} parent=11 // pred_fallthru
          _
        // Predicated region
        $region25: #{tpu_custom_call.1} parent=11 // pred_check
          %p322 = pneg %p135
        $region26: #{tpu_custom_call.1} parent=11 // pred_check_branch
          %324 = sbr.rel (%p322) target = $region28
        $region27: #{tpu_custom_call.1} parent=11 // pred_region
          %326 = vsyncadd [#allocation6], 0
          %s327 = sshll.u32 %s4, 4
          %s328 = int_to_ptr.hbm [resolvable:$true] %s327
          %s329 = sshll.u32 [#allocation7], 4
          %s330 = int_to_ptr.vmem [resolvable:$true] %s329
          %335 = dma.hbm_to_vmem [thread:$0]  %s328, 2048, %s330, [#allocation6], 128, 128, 8
        $region28: #{tpu_custom_call.1} parent=11 // pred_fallthru
          _
        // Predicated region
        $region29: #{tpu_custom_call.1} parent=11 // pred_check
          %p336 = pneg %p156
        $region30: #{tpu_custom_call.1} parent=11 // pred_check_branch
          %338 = sbr.rel (%p336) target = $region32
        $region31: #{tpu_custom_call.1} parent=11 // pred_region
          %340 = vsyncadd [#allocation9], 0
          %s341 = sshll.u32 %s5, 4
          %s342 = int_to_ptr.hbm [resolvable:$true] %s341
          %s343 = sshll.u32 [#allocation8], 4
          %s344 = int_to_ptr.vmem [resolvable:$true] %s343
          %349 = dma.hbm_to_vmem [thread:$0]  %s342, 3072, %s344, [#allocation9], 192, 192, 12
        $region32: #{tpu_custom_call.1} parent=11 // pred_fallthru
          _
        // Predicated region
        $region33: #{tpu_custom_call.1} parent=11 // pred_check
          %p350 = pneg %p177
        $region34: #{tpu_custom_call.1} parent=11 // pred_check_branch
          %352 = sbr.rel (%p350) target = $region36
        $region35: #{tpu_custom_call.1} parent=11 // pred_region
          _
        $region36: #{tpu_custom_call.1} parent=11 // pred_fallthru
          _
        // Predicated region
        $region37: #{tpu_custom_call.1} parent=11 // pred_check
          %p353 = pneg %p198
        $region38: #{tpu_custom_call.1} parent=11 // pred_check_branch
          %355 = sbr.rel (%p353) target = $region40
        $region39: #{tpu_custom_call.1} parent=11 // pred_region
          _
        $region40: #{tpu_custom_call.1} parent=11 // pred_fallthru
          _
        // Predicated region
        $region41: #{tpu_custom_call.1} parent=11 // pred_check
          %p356 = pneg %p219
        $region42: #{tpu_custom_call.1} parent=11 // pred_check_branch
          %358 = sbr.rel (%p356) target = $region44
        $region43: #{tpu_custom_call.1} parent=11 // pred_region
          _
        $region44: #{tpu_custom_call.1} parent=11 // pred_fallthru
          _
        // Predicated region
        $region45: #{tpu_custom_call.1} parent=11 // pred_check
          %p359 = pneg %p240
        $region46: #{tpu_custom_call.1} parent=11 // pred_check_branch
          %361 = sbr.rel (%p359) target = $region48
        $region47: #{tpu_custom_call.1} parent=11 // pred_region
          _
        $region48: #{tpu_custom_call.1} parent=11 // pred_fallthru
          _
        // Predicated region
        $region49: #{tpu_custom_call.1} parent=11 // pred_check
          %p362 = pneg %p261
        $region50: #{tpu_custom_call.1} parent=11 // pred_check_branch
          %364 = sbr.rel (%p362) target = $region52
        $region51: #{tpu_custom_call.1} parent=11 // pred_region
          _
        $region52: #{tpu_custom_call.1} parent=11 // pred_fallthru
          _
      $region12: #{tpu_custom_call.1} parent=5 // pred_fallthru
        _
      %p365 = scmp.lt.s32.totalorder %s25, 2
      // Predicated region
      $region53: #{tpu_custom_call.1} parent=5 // pred_check
        %p366 = pneg %p365
      $region54: #{tpu_custom_call.1} parent=5 // pred_check_branch
        %368 = sbr.rel (%p366) target = $region56
      $region55: #{tpu_custom_call.1} parent=5 // pred_region
        // Predicated region
        $region57: #{tpu_custom_call.1} parent=55 // pred_check
          %p369 = pneg %p45
        $region58: #{tpu_custom_call.1} parent=55 // pred_check_branch
          %371 = sbr.rel (%p369) target = $region60
        $region59: #{tpu_custom_call.1} parent=55 // pred_region
          %s372 = sand.u32 %s35, 1
          %s373 = scalar_lea.sflag [#allocation3], %s372
          %s374 = sand.u32 %s35, 1
          %s375 = smul.addr %s374, 48
          %s376 = scalar_lea.vmem [#allocation2], %s375
          %s377 = smul.u32 6, %s25
          %379 = vsyncadd %s373, 0
          %s380 = smul.addr %s377, 8
          %s381 = scalar_lea.hbm %s0, %s380
          %s382 = sshll.u32 %s381, 4
          %s383 = int_to_ptr.hbm [resolvable:$true] %s382
          %s384 = sshll.u32 %s376, 4
          %s385 = int_to_ptr.vmem [resolvable:$true] %s384
          %390 = dma.hbm_to_vmem [thread:$0]  %s383, 768, %s385, %s373, 128, 128, 8
        $region60: #{tpu_custom_call.1} parent=55 // pred_fallthru
          _
      $region56: #{tpu_custom_call.1} parent=5 // pred_fallthru
        _
      %p391 = scmp.le.s32.totalorder 1, %s25
      %p392 = scmp.lt.s32.totalorder %s25, 3
      %p393 = pnand %p391, %p392
      %p394 = pneg %p393
      // Predicated region
      $region61: #{tpu_custom_call.1} parent=5 // pred_check
        _
      $region62: #{tpu_custom_call.1} parent=5 // pred_check_branch
        %396 = sbr.rel (%p393) target = $region64
      $region63: #{tpu_custom_call.1} parent=5 // pred_region
        %s397 = ssub.s32 %s25, 1
        %s398 = sand.u32 %s38, 1
        %s399 = scalar_lea.sflag [#allocation3], %s398
        %s400 = sand.u32 %s38, 1
        %s401 = smul.addr %s400, 48
        %s402 = scalar_lea.vmem [#allocation2], %s401
        // Predicated region
        $region65: #{tpu_custom_call.1} parent=63 // pred_check
          %p403 = pneg %p51
        $region66: #{tpu_custom_call.1} parent=63 // pred_check_branch
          %405 = sbr.rel (%p403) target = $region68
        $region67: #{tpu_custom_call.1} parent=63 // pred_region
          %407 = dma.done %s399, 768
        $region68: #{tpu_custom_call.1} parent=63 // pred_fallthru
          _
        // Predicated region
        $region69: #{tpu_custom_call.1} parent=63 // pred_check
          %p408 = pneg %p72
        $region70: #{tpu_custom_call.1} parent=63 // pred_check_branch
          %410 = sbr.rel (%p408) target = $region72
        $region71: #{tpu_custom_call.1} parent=63 // pred_region
          %412 = dma.done [#allocation6], 3072
        $region72: #{tpu_custom_call.1} parent=63 // pred_fallthru
          _
        // Predicated region
        $region73: #{tpu_custom_call.1} parent=63 // pred_check
          %p413 = pneg %p135
        $region74: #{tpu_custom_call.1} parent=63 // pred_check_branch
          %415 = sbr.rel (%p413) target = $region76
        $region75: #{tpu_custom_call.1} parent=63 // pred_region
          %417 = dma.done [#allocation6], 2048
        $region76: #{tpu_custom_call.1} parent=63 // pred_fallthru
          _
        // Predicated region
        $region77: #{tpu_custom_call.1} parent=63 // pred_check
          %p418 = pneg %p156
        $region78: #{tpu_custom_call.1} parent=63 // pred_check_branch
          %420 = sbr.rel (%p418) target = $region80
        $region79: #{tpu_custom_call.1} parent=63 // pred_region
          %422 = dma.done [#allocation9], 3072
        $region80: #{tpu_custom_call.1} parent=63 // pred_fallthru
          _
        %s423 = sand.u32 %s38, 1
        %s424 = scalar_lea.sflag [#allocation3], %s423
        %s425 = sand.u32 %s38, 1
        %s426 = smul.addr %s425, 48
        %s427 = scalar_lea.vmem [#allocation2], %s426
        %p428 = pneg %p51
        %p429 = pneg %p48
        %p430 = pneg %p72
        %p431 = pneg %p69
        %p432 = pneg %p93
        %p433 = pneg %p90
        %p434 = pneg %p114
        %p435 = pneg %p111
        %p436 = pneg %p135
        %p437 = pneg %p132
        %p438 = pneg %p156
        %p439 = pneg %p153
        %p440 = pneg %p177
        %p441 = pneg %p174
        %p442 = pneg %p198
        %p443 = pneg %p195
        %p444 = pneg %p219
        %p445 = pneg %p216
        %p446 = pneg %p240
        %p447 = pneg %p237
        %p448 = pneg %p261
        %p449 = pneg %p258
        %p450 = pneg %p287
        %p451 = pneg %p284
        %s452 = sand.u32 %s274, 1
        %s453 = scalar_lea.sflag [#allocation4], %s452
        %s454 = sand.u32 %s274, 1
        %s455 = smul.addr %s454, 128
        %s456 = scalar_lea.vmem [#allocation10], %s455
        %s457 = smul.u32 6, %s30
        %s458 = smul.u32 8, %s30
        %v460 = vld [vmem:[%s402] sm:$0xff]
        %v461 = vld [vmem:[%s402 + $0x8] sm:$0xff]
        %v462 = vld [vmem:[%s402 + $0x10] sm:$0xff]
        %v463 = vld [vmem:[%s402 + $0x18] sm:$0xff]
        %v464 = vld [vmem:[%s402 + $0x20] sm:$0xff]
        %v465 = vld [vmem:[%s402 + $0x28] sm:$0xff]
        %vm472 = vcmask 1046528
        %v473 = vrot.slane %v460, 1
        %v474 = vrot.slane %v461, 1
        %v475 = vsel %vm472, %v473, %v474
        %v476 = vrot.slane %v462, 1
        %v477 = vsel %vm472, %v474, %v476
        %v478 = vrot.slane %v463, 1
        %v479 = vsel %vm472, %v476, %v478
        %v480 = vrot.slane %v464, 1
        %v481 = vsel %vm472, %v478, %v480
        %v482 = vrot.slane %v465, 1
        %v483 = vsel %vm472, %v480, %v482
        %vm490 = vcmask 1045504
        %v491 = vrot.slane %v460, 2
        %v492 = vrot.slane %v461, 2
        %v493 = vsel %vm490, %v491, %v492
        %v494 = vrot.slane %v462, 2
        %v495 = vsel %vm490, %v492, %v494
        %v496 = vrot.slane %v463, 2
        %v497 = vsel %vm490, %v494, %v496
        %v498 = vrot.slane %v464, 2
        %v499 = vsel %vm490, %v496, %v498
        %v500 = vrot.slane %v465, 2
        %v501 = vsel %vm490, %v498, %v500
        %v508 = vpack.c.bf16 %v461, %v460
        %v509 = vpack.c.bf16 %v477, %v475
        %v510 = vpack.c.bf16 %v495, %v493
        %v511 = vpack.c.bf16 %v463, %v462
        %v512 = vpack.c.bf16 %v481, %v479
        %v513 = vpack.c.bf16 %v499, %v497
        %v514 = vpack.c.bf16 %v465, %v464
        %v515 = vpack.c.bf16 %v482, %v483
        %v516 = vpack.c.bf16 %v500, %v501
        %v517 = vld [vmem:[#allocation5] sm:$0xf]
        %v518 = vld [vmem:[#allocation5 + $0x4] sm:$0xf]
        %v519 = vld [vmem:[#allocation5 + $0x8] sm:$0xf]
        %v520 = vld [vmem:[#allocation5 + $0xc] sm:$0xf]
        %v521 = vld [vmem:[#allocation5 + $0x10] sm:$0xf]
        %v522 = vld [vmem:[#allocation5 + $0x14] sm:$0xf]
        %v523 = vld [vmem:[#allocation5 + $0x18] sm:$0xf]
        %v524 = vld [vmem:[#allocation5 + $0x1c] sm:$0xf]
        %v525 = vld [vmem:[#allocation5 + $0x20] sm:$0xf]
        %v526 = vld [vmem:[#allocation5 + $0x24] sm:$0xf]
        %v527 = vld [vmem:[#allocation5 + $0x28] sm:$0xf]
        %v528 = vld [vmem:[#allocation5 + $0x2c] sm:$0xf]
        %v529 = vld [vmem:[#allocation5 + $0x30] sm:$0xf]
        %v530 = vld [vmem:[#allocation5 + $0x34] sm:$0xf]
        %v531 = vld [vmem:[#allocation5 + $0x38] sm:$0xf]
        %v532 = vld [vmem:[#allocation5 + $0x3c] sm:$0xf]
        %v533 = vld [vmem:[#allocation5 + $0x40] sm:$0xf]
        %v534 = vld [vmem:[#allocation5 + $0x44] sm:$0xf]
        %v535 = vld [vmem:[#allocation5 + $0x48] sm:$0xf]
        %v536 = vld [vmem:[#allocation5 + $0x4c] sm:$0xf]
        %v537 = vld [vmem:[#allocation5 + $0x50] sm:$0xf]
        %v538 = vld [vmem:[#allocation5 + $0x54] sm:$0xf]
        %v539 = vld [vmem:[#allocation5 + $0x58] sm:$0xf]
        %v540 = vld [vmem:[#allocation5 + $0x5c] sm:$0xf]
        %v541 = vld [vmem:[#allocation5 + $0x60] sm:$0xf]
        %v542 = vld [vmem:[#allocation5 + $0x64] sm:$0xf]
        %v543 = vld [vmem:[#allocation5 + $0x68] sm:$0xf]
        %v544 = vld [vmem:[#allocation5 + $0x6c] sm:$0xf]
        %v545 = vld [vmem:[#allocation5 + $0x70] sm:$0xf]
        %v546 = vld [vmem:[#allocation5 + $0x74] sm:$0xf]
        %v547 = vld [vmem:[#allocation5 + $0x78] sm:$0xf]
        %v548 = vld [vmem:[#allocation5 + $0x7c] sm:$0xf]
        %v549 = vld [vmem:[#allocation5 + $0x80] sm:$0xf]
        %v550 = vld [vmem:[#allocation5 + $0x84] sm:$0xf]
        %v551 = vld [vmem:[#allocation5 + $0x88] sm:$0xf]
        %v552 = vld [vmem:[#allocation5 + $0x8c] sm:$0xf]
        %v553 = vld [vmem:[#allocation5 + $0x90] sm:$0xf]
        %v554 = vld [vmem:[#allocation5 + $0x94] sm:$0xf]
        %v555 = vld [vmem:[#allocation5 + $0x98] sm:$0xf]
        %v556 = vld [vmem:[#allocation5 + $0x9c] sm:$0xf]
        %v557 = vld [vmem:[#allocation5 + $0xa0] sm:$0xf]
        %v558 = vld [vmem:[#allocation5 + $0xa4] sm:$0xf]
        %v559 = vld [vmem:[#allocation5 + $0xa8] sm:$0xf]
        %v560 = vld [vmem:[#allocation5 + $0xac] sm:$0xf]
        %v561 = vld [vmem:[#allocation5 + $0xb0] sm:$0xf]
        %v562 = vld [vmem:[#allocation5 + $0xb4] sm:$0xf]
        %v563 = vld [vmem:[#allocation5 + $0xb8] sm:$0xf]
        %v564 = vld [vmem:[#allocation5 + $0xbc] sm:$0xf]
        %v565 = vld [vmem:[%s2] sm:$0x1]
        %v567 = vperm.slane %v565, 0
        %v617 = vunpack.c.l.b16 %v517
        %v618 = vunpack.c.l.b16 %v518
        %v619 = vunpack.c.l.b16 %v519
        %v620 = vunpack.c.l.b16 %v520
        %v621 = vunpack.c.l.b16 %v521
        %v622 = vunpack.c.l.b16 %v522
        %v623 = vunpack.c.l.b16 %v523
        %v624 = vunpack.c.l.b16 %v524
        %v625 = vunpack.c.l.b16 %v525
        %v626 = vunpack.c.l.b16 %v526
        %v627 = vunpack.c.l.b16 %v527
        %v628 = vunpack.c.l.b16 %v528
        %v629 = vunpack.c.l.b16 %v529
        %v630 = vunpack.c.l.b16 %v530
        %v631 = vunpack.c.l.b16 %v531
        %v632 = vunpack.c.l.b16 %v532
        %v633 = vunpack.c.l.b16 %v533
        %v634 = vunpack.c.l.b16 %v534
        %v635 = vunpack.c.l.b16 %v535
        %v636 = vunpack.c.l.b16 %v536
        %v637 = vunpack.c.l.b16 %v537
        %v638 = vunpack.c.l.b16 %v538
        %v639 = vunpack.c.l.b16 %v539
        %v640 = vunpack.c.l.b16 %v540
        %v641 = vunpack.c.l.b16 %v541
        %v642 = vunpack.c.l.b16 %v542
        %v643 = vunpack.c.l.b16 %v543
        %v644 = vunpack.c.l.b16 %v544
        %v645 = vunpack.c.l.b16 %v545
        %v646 = vunpack.c.l.b16 %v546
        %v647 = vunpack.c.l.b16 %v547
        %v648 = vunpack.c.l.b16 %v548
        %v649 = vunpack.c.l.b16 %v549
        %v650 = vunpack.c.l.b16 %v550
        %v651 = vunpack.c.l.b16 %v551
        %v652 = vunpack.c.l.b16 %v552
        %v653 = vunpack.c.l.b16 %v553
        %v654 = vunpack.c.l.b16 %v554
        %v655 = vunpack.c.l.b16 %v555
        %v656 = vunpack.c.l.b16 %v556
        %v657 = vunpack.c.l.b16 %v557
        %v658 = vunpack.c.l.b16 %v558
        %v659 = vunpack.c.l.b16 %v559
        %v660 = vunpack.c.l.b16 %v560
        %v661 = vunpack.c.l.b16 %v561
        %v662 = vunpack.c.l.b16 %v562
        %v663 = vunpack.c.l.b16 %v563
        %v664 = vunpack.c.l.b16 %v564
        %v665 = vpack.c.b16 %v618, %v617
        %v666 = vpack.c.b16 %v620, %v619
        %v667 = vpack.c.b16 %v622, %v621
        %v668 = vpack.c.b16 %v624, %v623
        %v669 = vpack.c.b16 %v626, %v625
        %v670 = vpack.c.b16 %v628, %v627
        %v671 = vpack.c.b16 %v630, %v629
        %v672 = vpack.c.b16 %v632, %v631
        %v673 = vpack.c.b16 %v634, %v633
        %v674 = vpack.c.b16 %v636, %v635
        %v675 = vpack.c.b16 %v638, %v637
        %v676 = vpack.c.b16 %v640, %v639
        %v677 = vpack.c.b16 %v642, %v641
        %v678 = vpack.c.b16 %v644, %v643
        %v679 = vpack.c.b16 %v646, %v645
        %v680 = vpack.c.b16 %v648, %v647
        %v681 = vpack.c.b16 %v650, %v649
        %v682 = vpack.c.b16 %v652, %v651
        %v683 = vpack.c.b16 %v654, %v653
        %v684 = vpack.c.b16 %v656, %v655
        %v685 = vpack.c.b16 %v658, %v657
        %v686 = vpack.c.b16 %v660, %v659
        %v687 = vpack.c.b16 %v662, %v661
        %v688 = vpack.c.b16 %v664, %v663
        %713 = vmatpush.bf16.msra.mxu0 %v672
        %714 = vmatpush.bf16.msra.mxu0 %v671
        %715 = vmatpush.bf16.msra.mxu0 %v670
        %716 = vmatpush.bf16.msra.mxu0 %v669
        %717 = vmatpush.bf16.msra.mxu0 %v668
        %718 = vmatpush.bf16.msra.mxu0 %v667
        %719 = vmatpush.bf16.msra.mxu0 %v666
        %720 = vmatpush.bf16.msra.mxu0 %v665
        %721 = vmatmul.bf16.gmra.mxu0 %v508
        %v722 = vpop.f32.mrf.mxu0
        %v723 = vadd.f32 %v567, %v722
        %v724 = vpop.f32.mrf.mxu0
        %v725 = vadd.f32 %v567, %v724
        %726 = vmatmul.bf16.gmra.mxu0 %v511
        %v727 = vpop.f32.mrf.mxu0
        %v728 = vadd.f32 %v567, %v727
        %v729 = vpop.f32.mrf.mxu0
        %v730 = vadd.f32 %v567, %v729
        %731 = vmatmul.bf16.gmra.mxu0 %v514
        %v732 = vpop.f32.mrf.mxu0
        %v733 = vadd.f32 %v567, %v732
        %v734 = vpop.f32.mrf.mxu0
        %v735 = vadd.f32 %v567, %v734
        %736 = vdwg.mxu0
        %737 = vmatpush.bf16.msra.mxu0 %v680
        %738 = vmatpush.bf16.msra.mxu0 %v679
        %739 = vmatpush.bf16.msra.mxu0 %v678
        %740 = vmatpush.bf16.msra.mxu0 %v677
        %741 = vmatpush.bf16.msra.mxu0 %v676
        %742 = vmatpush.bf16.msra.mxu0 %v675
        %743 = vmatpush.bf16.msra.mxu0 %v674
        %744 = vmatpush.bf16.msra.mxu0 %v673
        %745 = vmatmul.bf16.gmra.mxu0 %v509
        %v746 = vpop.f32.mrf.mxu0
        %v747 = vadd.f32 %v723, %v746
        %v748 = vpop.f32.mrf.mxu0
        %v749 = vadd.f32 %v725, %v748
        %750 = vmatmul.bf16.gmra.mxu0 %v512
        %v751 = vpop.f32.mrf.mxu0
        %v752 = vadd.f32 %v728, %v751
        %v753 = vpop.f32.mrf.mxu0
        %v754 = vadd.f32 %v730, %v753
        %755 = vmatmul.bf16.gmra.mxu0 %v515
        %v756 = vpop.f32.mrf.mxu0
        %v757 = vadd.f32 %v733, %v756
        %v758 = vpop.f32.mrf.mxu0
        %v759 = vadd.f32 %v735, %v758
        %760 = vdwg.mxu0
        %761 = vmatpush.bf16.msra.mxu0 %v688
        %762 = vmatpush.bf16.msra.mxu0 %v687
        %763 = vmatpush.bf16.msra.mxu0 %v686
        %764 = vmatpush.bf16.msra.mxu0 %v685
        %765 = vmatpush.bf16.msra.mxu0 %v684
        %766 = vmatpush.bf16.msra.mxu0 %v683
        %767 = vmatpush.bf16.msra.mxu0 %v682
        %768 = vmatpush.bf16.msra.mxu0 %v681
        %769 = vmatmul.bf16.gmra.mxu0 %v510
        %v770 = vpop.f32.mrf.mxu0
        %v771 = vadd.f32 %v747, %v770
        %v772 = vpop.f32.mrf.mxu0
        %v773 = vadd.f32 %v749, %v772
        %774 = vmatmul.bf16.gmra.mxu0 %v513
        %v775 = vpop.f32.mrf.mxu0
        %v776 = vadd.f32 %v752, %v775
        %v777 = vpop.f32.mrf.mxu0
        %v778 = vadd.f32 %v754, %v777
        %779 = vmatmul.bf16.gmra.mxu0 %v516
        %v780 = vpop.f32.mrf.mxu0
        %v781 = vadd.f32 %v757, %v780
        %v782 = vpop.f32.mrf.mxu0
        %v783 = vadd.f32 %v759, %v782
        %784 = vdwg.mxu0
        %v785 = vmax.f32 %v771, 0.0
        %v786 = vmax.f32 %v773, 0.0
        %v787 = vmax.f32 %v776, 0.0
        %v788 = vmax.f32 %v778, 0.0
        %v789 = vmax.f32 %v781, 0.0
        %v790 = vmax.f32 %v783, 0.0
        %v791 = vpack.c.bf16 %v786, %v785
        %v792 = vpack.c.bf16 %v788, %v787
        %v793 = vpack.c.bf16 %v790, %v789
        %v794 = vld [vmem:[%s3] sm:$0xf]
        %v795 = vld [vmem:[%s3 + $0x4] sm:$0xf]
        %v796 = vld [vmem:[%s3 + $0x8] sm:$0xf]
        %v797 = vld [vmem:[%s3 + $0xc] sm:$0xf]
        %v798 = vld [vmem:[%s3 + $0x10] sm:$0xf]
        %v799 = vld [vmem:[%s3 + $0x14] sm:$0xf]
        %v800 = vld [vmem:[%s3 + $0x18] sm:$0xf]
        %v801 = vld [vmem:[%s3 + $0x1c] sm:$0xf]
        %v810 = vunpack.c.l.b16 %v794
        %v811 = vunpack.c.l.b16 %v795
        %v812 = vunpack.c.l.b16 %v796
        %v813 = vunpack.c.l.b16 %v797
        %v814 = vunpack.c.l.b16 %v798
        %v815 = vunpack.c.l.b16 %v799
        %v816 = vunpack.c.l.b16 %v800
        %v817 = vunpack.c.l.b16 %v801
        %v818 = vpack.c.b16 %v811, %v810
        %v819 = vpack.c.b16 %v813, %v812
        %v820 = vpack.c.b16 %v815, %v814
        %v821 = vpack.c.b16 %v817, %v816
        %vm822 = vcmask 375808
        %v824 = vsel %vm822, %v818, 0
        %v827 = vsel %vm822, %v819, 0
        %v830 = vsel %vm822, %v820, 0
        %v833 = vsel %vm822, %v821, 0
        %v836 = vsel %vm472, %v793, 0
        %838 = vmatpush.bf16.msra.mxu0 0
        %839 = vmatpush.bf16.msra.mxu0 0
        %840 = vmatpush.bf16.msra.mxu0 0
        %841 = vmatpush.bf16.msra.mxu0 0
        %842 = vmatpush.bf16.msra.mxu0 0
        %843 = vmatpush.bf16.msra.mxu0 %v836
        %844 = vmatpush.bf16.msra.mxu0 %v792
        %845 = vmatpush.bf16.msra.mxu0 %v791
        %846 = vmatmul.bf16.gmra.mxu0 %v824
        %v847 = vpop.f32.mrf.mxu0
        %v848 = vadd.f32 0.0, %v847
        %v849 = vpop.f32.mrf.mxu0
        %v850 = vadd.f32 0.0, %v849
        %851 = vmatmul.bf16.gmra.mxu0 %v827
        %v852 = vpop.f32.mrf.mxu0
        %v853 = vadd.f32 0.0, %v852
        %v854 = vpop.f32.mrf.mxu0
        %v855 = vadd.f32 0.0, %v854
        %856 = vmatmul.bf16.gmra.mxu0 %v830
        %v857 = vpop.f32.mrf.mxu0
        %v858 = vadd.f32 0.0, %v857
        %v859 = vpop.f32.mrf.mxu0
        %v860 = vadd.f32 0.0, %v859
        %861 = vmatmul.bf16.gmra.mxu0 %v833
        %v862 = vpop.f32.mrf.mxu0
        %v863 = vadd.f32 0.0, %v862
        %v864 = vpop.f32.mrf.mxu0
        %v865 = vadd.f32 0.0, %v864
        %866 = vdwg.mxu0
        %v867 = vpack.c.bf16 %v850, %v848
        %v868 = vpack.c.bf16 %v855, %v853
        %v869 = vpack.c.bf16 %v860, %v858
        %v870 = vpack.c.bf16 %v865, %v863
        %v871 = vld [vmem:[#allocation7] sm:$0xff]
        %v872 = vld [vmem:[#allocation7 + $0x8] sm:$0xff]
        %v873 = vld [vmem:[#allocation7 + $0x10] sm:$0xff]
        %v874 = vld [vmem:[#allocation7 + $0x18] sm:$0xff]
        %v875 = vld [vmem:[#allocation7 + $0x20] sm:$0xff]
        %v876 = vld [vmem:[#allocation7 + $0x28] sm:$0xff]
        %v877 = vld [vmem:[#allocation7 + $0x30] sm:$0xff]
        %v878 = vld [vmem:[#allocation7 + $0x38] sm:$0xff]
        %v879 = vld [vmem:[#allocation7 + $0x40] sm:$0xff]
        %v880 = vld [vmem:[#allocation7 + $0x48] sm:$0xff]
        %v881 = vld [vmem:[#allocation7 + $0x50] sm:$0xff]
        %v882 = vld [vmem:[#allocation7 + $0x58] sm:$0xff]
        %v883 = vld [vmem:[#allocation7 + $0x60] sm:$0xff]
        %v884 = vld [vmem:[#allocation7 + $0x68] sm:$0xff]
        %v885 = vld [vmem:[#allocation7 + $0x70] sm:$0xff]
        %v886 = vld [vmem:[#allocation7 + $0x78] sm:$0xff]
        %v903 = vunpack.c.l.b16 %v871
        %v904 = vunpack.c.h.b16 %v871
        %v905 = vunpack.c.l.b16 %v872
        %v906 = vunpack.c.h.b16 %v872
        %v907 = vunpack.c.l.b16 %v873
        %v908 = vunpack.c.h.b16 %v873
        %v909 = vunpack.c.l.b16 %v874
        %v910 = vunpack.c.h.b16 %v874
        %v911 = vunpack.c.l.b16 %v875
        %v912 = vunpack.c.h.b16 %v875
        %v913 = vunpack.c.l.b16 %v876
        %v914 = vunpack.c.h.b16 %v876
        %v915 = vunpack.c.l.b16 %v877
        %v916 = vunpack.c.h.b16 %v877
        %v917 = vunpack.c.l.b16 %v878
        %v918 = vunpack.c.h.b16 %v878
        %v919 = vunpack.c.l.b16 %v879
        %v920 = vunpack.c.h.b16 %v879
        %v921 = vunpack.c.l.b16 %v880
        %v922 = vunpack.c.h.b16 %v880
        %v923 = vunpack.c.l.b16 %v881
        %v924 = vunpack.c.h.b16 %v881
        %v925 = vunpack.c.l.b16 %v882
        %v926 = vunpack.c.h.b16 %v882
        %v927 = vunpack.c.l.b16 %v883
        %v928 = vunpack.c.h.b16 %v883
        %v929 = vunpack.c.l.b16 %v884
        %v930 = vunpack.c.h.b16 %v884
        %v931 = vunpack.c.l.b16 %v885
        %v932 = vunpack.c.h.b16 %v885
        %v933 = vunpack.c.l.b16 %v886
        %v934 = vunpack.c.h.b16 %v886
        %v935 = vpack.c.b16 %v905, %v903
        %v936 = vpack.c.b16 %v906, %v904
        %v937 = vpack.c.b16 %v909, %v907
        %v938 = vpack.c.b16 %v910, %v908
        %v939 = vpack.c.b16 %v913, %v911
        %v940 = vpack.c.b16 %v914, %v912
        %v941 = vpack.c.b16 %v917, %v915
        %v942 = vpack.c.b16 %v918, %v916
        %v943 = vpack.c.b16 %v921, %v919
        %v944 = vpack.c.b16 %v922, %v920
        %v945 = vpack.c.b16 %v925, %v923
        %v946 = vpack.c.b16 %v926, %v924
        %v947 = vpack.c.b16 %v929, %v927
        %v948 = vpack.c.b16 %v930, %v928
        %v949 = vpack.c.b16 %v933, %v931
        %v950 = vpack.c.b16 %v934, %v932
        %967 = vmatpush.bf16.msra.mxu0 %v949
        %968 = vmatpush.bf16.msra.mxu0 %v947
        %969 = vmatpush.bf16.msra.mxu0 %v945
        %970 = vmatpush.bf16.msra.mxu0 %v943
        %971 = vmatpush.bf16.msra.mxu0 %v941
        %972 = vmatpush.bf16.msra.mxu0 %v939
        %973 = vmatpush.bf16.msra.mxu0 %v937
        %974 = vmatpush.bf16.msra.mxu0 %v935
        %975 = vmatmul.bf16.gmra.mxu0 %v867
        %v976 = vpop.f32.mrf.mxu0
        %v977 = vadd.f32 0.0, %v976
        %v978 = vpop.f32.mrf.mxu0
        %v979 = vadd.f32 0.0, %v978
        %980 = vmatmul.bf16.gmra.mxu0 %v868
        %v981 = vpop.f32.mrf.mxu0
        %v982 = vadd.f32 0.0, %v981
        %v983 = vpop.f32.mrf.mxu0
        %v984 = vadd.f32 0.0, %v983
        %985 = vmatmul.bf16.gmra.mxu0 %v869
        %v986 = vpop.f32.mrf.mxu0
        %v987 = vadd.f32 0.0, %v986
        %v988 = vpop.f32.mrf.mxu0
        %v989 = vadd.f32 0.0, %v988
        %990 = vmatmul.bf16.gmra.mxu0 %v870
        %v991 = vpop.f32.mrf.mxu0
        %v992 = vadd.f32 0.0, %v991
        %v993 = vpop.f32.mrf.mxu0
        %v994 = vadd.f32 0.0, %v993
        %995 = vdwg.mxu0
        %996 = vmatpush.bf16.msra.mxu0 %v950
        %997 = vmatpush.bf16.msra.mxu0 %v948
        %998 = vmatpush.bf16.msra.mxu0 %v946
        %999 = vmatpush.bf16.msra.mxu0 %v944
        %1000 = vmatpush.bf16.msra.mxu0 %v942
        %1001 = vmatpush.bf16.msra.mxu0 %v940
        %1002 = vmatpush.bf16.msra.mxu0 %v938
        %1003 = vmatpush.bf16.msra.mxu0 %v936
        %1004 = vmatmul.bf16.gmra.mxu0 %v867
        %v1005 = vpop.f32.mrf.mxu0
        %v1006 = vadd.f32 0.0, %v1005
        %v1007 = vpop.f32.mrf.mxu0
        %v1008 = vadd.f32 0.0, %v1007
        %1009 = vmatmul.bf16.gmra.mxu0 %v868
        %v1010 = vpop.f32.mrf.mxu0
        %v1011 = vadd.f32 0.0, %v1010
        %v1012 = vpop.f32.mrf.mxu0
        %v1013 = vadd.f32 0.0, %v1012
        %1014 = vmatmul.bf16.gmra.mxu0 %v869
        %v1015 = vpop.f32.mrf.mxu0
        %v1016 = vadd.f32 0.0, %v1015
        %v1017 = vpop.f32.mrf.mxu0
        %v1018 = vadd.f32 0.0, %v1017
        %1019 = vmatmul.bf16.gmra.mxu0 %v870
        %v1020 = vpop.f32.mrf.mxu0
        %v1021 = vadd.f32 0.0, %v1020
        %v1022 = vpop.f32.mrf.mxu0
        %v1023 = vadd.f32 0.0, %v1022
        %1024 = vdwg.mxu0
        %v1025 = vld [vmem:[#allocation8] sm:$0xff]
        %v1026 = vld [vmem:[#allocation8 + $0x8] sm:$0xf]
        %v1027 = vld [vmem:[#allocation8 + $0xc] sm:$0xff]
        %v1028 = vld [vmem:[#allocation8 + $0x14] sm:$0xf]
        %v1029 = vld [vmem:[#allocation8 + $0x18] sm:$0xff]
        %v1030 = vld [vmem:[#allocation8 + $0x20] sm:$0xf]
        %v1031 = vld [vmem:[#allocation8 + $0x24] sm:$0xff]
        %v1032 = vld [vmem:[#allocation8 + $0x2c] sm:$0xf]
        %v1033 = vld [vmem:[#allocation8 + $0x30] sm:$0xff]
        %v1034 = vld [vmem:[#allocation8 + $0x38] sm:$0xf]
        %v1035 = vld [vmem:[#allocation8 + $0x3c] sm:$0xff]
        %v1036 = vld [vmem:[#allocation8 + $0x44] sm:$0xf]
        %v1037 = vld [vmem:[#allocation8 + $0x48] sm:$0xff]
        %v1038 = vld [vmem:[#allocation8 + $0x50] sm:$0xf]
        %v1039 = vld [vmem:[#allocation8 + $0x54] sm:$0xff]
        %v1040 = vld [vmem:[#allocation8 + $0x5c] sm:$0xf]
        %v1041 = vld [vmem:[#allocation8 + $0x60] sm:$0xff]
        %v1042 = vld [vmem:[#allocation8 + $0x68] sm:$0xf]
        %v1043 = vld [vmem:[#allocation8 + $0x6c] sm:$0xff]
        %v1044 = vld [vmem:[#allocation8 + $0x74] sm:$0xf]
        %v1045 = vld [vmem:[#allocation8 + $0x78] sm:$0xff]
        %v1046 = vld [vmem:[#allocation8 + $0x80] sm:$0xf]
        %v1047 = vld [vmem:[#allocation8 + $0x84] sm:$0xff]
        %v1048 = vld [vmem:[#allocation8 + $0x8c] sm:$0xf]
        %v1049 = vld [vmem:[#allocation8 + $0x90] sm:$0xff]
        %v1050 = vld [vmem:[#allocation8 + $0x98] sm:$0xf]
        %v1051 = vld [vmem:[#allocation8 + $0x9c] sm:$0xff]
        %v1052 = vld [vmem:[#allocation8 + $0xa4] sm:$0xf]
        %v1053 = vld [vmem:[#allocation8 + $0xa8] sm:$0xff]
        %v1054 = vld [vmem:[#allocation8 + $0xb0] sm:$0xf]
        %v1055 = vld [vmem:[#allocation8 + $0xb4] sm:$0xff]
        %v1056 = vld [vmem:[#allocation8 + $0xbc] sm:$0xf]
        %v1089 = vunpack.c.l.b16 %v1025
        %v1090 = vunpack.c.h.b16 %v1025
        %v1091 = vunpack.c.l.b16 %v1026
        %v1092 = vunpack.c.l.b16 %v1027
        %v1093 = vunpack.c.h.b16 %v1027
        %v1094 = vunpack.c.l.b16 %v1028
        %v1095 = vunpack.c.l.b16 %v1029
        %v1096 = vunpack.c.h.b16 %v1029
        %v1097 = vunpack.c.l.b16 %v1030
        %v1098 = vunpack.c.l.b16 %v1031
        %v1099 = vunpack.c.h.b16 %v1031
        %v1100 = vunpack.c.l.b16 %v1032
        %v1101 = vunpack.c.l.b16 %v1033
        %v1102 = vunpack.c.h.b16 %v1033
        %v1103 = vunpack.c.l.b16 %v1034
        %v1104 = vunpack.c.l.b16 %v1035
        %v1105 = vunpack.c.h.b16 %v1035
        %v1106 = vunpack.c.l.b16 %v1036
        %v1107 = vunpack.c.l.b16 %v1037
        %v1108 = vunpack.c.h.b16 %v1037
        %v1109 = vunpack.c.l.b16 %v1038
        %v1110 = vunpack.c.l.b16 %v1039
        %v1111 = vunpack.c.h.b16 %v1039
        %v1112 = vunpack.c.l.b16 %v1040
        %v1113 = vunpack.c.l.b16 %v1041
        %v1114 = vunpack.c.h.b16 %v1041
        %v1115 = vunpack.c.l.b16 %v1042
        %v1116 = vunpack.c.l.b16 %v1043
        %v1117 = vunpack.c.h.b16 %v1043
        %v1118 = vunpack.c.l.b16 %v1044
        %v1119 = vunpack.c.l.b16 %v1045
        %v1120 = vunpack.c.h.b16 %v1045
        %v1121 = vunpack.c.l.b16 %v1046
        %v1122 = vunpack.c.l.b16 %v1047
        %v1123 = vunpack.c.h.b16 %v1047
        %v1124 = vunpack.c.l.b16 %v1048
        %v1125 = vunpack.c.l.b16 %v1049
        %v1126 = vunpack.c.h.b16 %v1049
        %v1127 = vunpack.c.l.b16 %v1050
        %v1128 = vunpack.c.l.b16 %v1051
        %v1129 = vunpack.c.h.b16 %v1051
        %v1130 = vunpack.c.l.b16 %v1052
        %v1131 = vunpack.c.l.b16 %v1053
        %v1132 = vunpack.c.h.b16 %v1053
        %v1133 = vunpack.c.l.b16 %v1054
        %v1134 = vunpack.c.l.b16 %v1055
        %v1135 = vunpack.c.h.b16 %v1055
        %v1136 = vunpack.c.l.b16 %v1056
        %v1137 = vpack.c.b16 %v1092, %v1089
        %v1138 = vpack.c.b16 %v1093, %v1090
        %v1139 = vpack.c.b16 %v1094, %v1091
        %v1140 = vpack.c.b16 %v1098, %v1095
        %v1141 = vpack.c.b16 %v1099, %v1096
        %v1142 = vpack.c.b16 %v1100, %v1097
        %v1143 = vpack.c.b16 %v1104, %v1101
        %v1144 = vpack.c.b16 %v1105, %v1102
        %v1145 = vpack.c.b16 %v1106, %v1103
        %v1146 = vpack.c.b16 %v1110, %v1107
        %v1147 = vpack.c.b16 %v1111, %v1108
        %v1148 = vpack.c.b16 %v1112, %v1109
        %v1149 = vpack.c.b16 %v1116, %v1113
        %v1150 = vpack.c.b16 %v1117, %v1114
        %v1151 = vpack.c.b16 %v1118, %v1115
        %v1152 = vpack.c.b16 %v1122, %v1119
        %v1153 = vpack.c.b16 %v1123, %v1120
        %v1154 = vpack.c.b16 %v1124, %v1121
        %v1155 = vpack.c.b16 %v1128, %v1125
        %v1156 = vpack.c.b16 %v1129, %v1126
        %v1157 = vpack.c.b16 %v1130, %v1127
        %v1158 = vpack.c.b16 %v1134, %v1131
        %v1159 = vpack.c.b16 %v1135, %v1132
        %v1160 = vpack.c.b16 %v1136, %v1133
        %1185 = vmatpush.bf16.msra.mxu0 %v1158
        %1186 = vmatpush.bf16.msra.mxu0 %v1155
        %1187 = vmatpush.bf16.msra.mxu0 %v1152
        %1188 = vmatpush.bf16.msra.mxu0 %v1149
        %1189 = vmatpush.bf16.msra.mxu0 %v1146
        %1190 = vmatpush.bf16.msra.mxu0 %v1143
        %1191 = vmatpush.bf16.msra.mxu0 %v1140
        %1192 = vmatpush.bf16.msra.mxu0 %v1137
        %1193 = vmatmul.bf16.gmra.mxu0 %v867
        %v1194 = vpop.f32.mrf.mxu0
        %v1195 = vadd.f32 0.0, %v1194
        %v1196 = vpop.f32.mrf.mxu0
        %v1197 = vadd.f32 0.0, %v1196
        %1198 = vmatmul.bf16.gmra.mxu0 %v868
        %v1199 = vpop.f32.mrf.mxu0
        %v1200 = vadd.f32 0.0, %v1199
        %v1201 = vpop.f32.mrf.mxu0
        %v1202 = vadd.f32 0.0, %v1201
        %1203 = vmatmul.bf16.gmra.mxu0 %v869
        %v1204 = vpop.f32.mrf.mxu0
        %v1205 = vadd.f32 0.0, %v1204
        %v1206 = vpop.f32.mrf.mxu0
        %v1207 = vadd.f32 0.0, %v1206
        %1208 = vmatmul.bf16.gmra.mxu0 %v870
        %v1209 = vpop.f32.mrf.mxu0
        %v1210 = vadd.f32 0.0, %v1209
        %v1211 = vpop.f32.mrf.mxu0
        %v1212 = vadd.f32 0.0, %v1211
        %1213 = vdwg.mxu0
        %1214 = vmatpush.bf16.msra.mxu0 %v1159
        %1215 = vmatpush.bf16.msra.mxu0 %v1156
        %1216 = vmatpush.bf16.msra.mxu0 %v1153
        %1217 = vmatpush.bf16.msra.mxu0 %v1150
        %1218 = vmatpush.bf16.msra.mxu0 %v1147
        %1219 = vmatpush.bf16.msra.mxu0 %v1144
        %1220 = vmatpush.bf16.msra.mxu0 %v1141
        %1221 = vmatpush.bf16.msra.mxu0 %v1138
        %1222 = vmatmul.bf16.gmra.mxu0 %v867
        %v1223 = vpop.f32.mrf.mxu0
        %v1224 = vadd.f32 0.0, %v1223
        %v1225 = vpop.f32.mrf.mxu0
        %v1226 = vadd.f32 0.0, %v1225
        %1227 = vmatmul.bf16.gmra.mxu0 %v868
        %v1228 = vpop.f32.mrf.mxu0
        %v1229 = vadd.f32 0.0, %v1228
        %v1230 = vpop.f32.mrf.mxu0
        %v1231 = vadd.f32 0.0, %v1230
        %1232 = vmatmul.bf16.gmra.mxu0 %v869
        %v1233 = vpop.f32.mrf.mxu0
        %v1234 = vadd.f32 0.0, %v1233
        %v1235 = vpop.f32.mrf.mxu0
        %v1236 = vadd.f32 0.0, %v1235
        %1237 = vmatmul.bf16.gmra.mxu0 %v870
        %v1238 = vpop.f32.mrf.mxu0
        %v1239 = vadd.f32 0.0, %v1238
        %v1240 = vpop.f32.mrf.mxu0
        %v1241 = vadd.f32 0.0, %v1240
        %1242 = vdwg.mxu0
        %1243 = vmatpush.bf16.msra.mxu0 %v1160
        %1244 = vmatpush.bf16.msra.mxu0 %v1157
        %1245 = vmatpush.bf16.msra.mxu0 %v1154
        %1246 = vmatpush.bf16.msra.mxu0 %v1151
        %1247 = vmatpush.bf16.msra.mxu0 %v1148
        %1248 = vmatpush.bf16.msra.mxu0 %v1145
        %1249 = vmatpush.bf16.msra.mxu0 %v1142
        %1250 = vmatpush.bf16.msra.mxu0 %v1139
        %1251 = vmatmul.bf16.gmra.mxu0 %v867
        %v1252 = vpop.f32.mrf.mxu0
        %v1253 = vadd.f32 0.0, %v1252
        %v1254 = vpop.f32.mrf.mxu0
        %v1255 = vadd.f32 0.0, %v1254
        %1256 = vmatmul.bf16.gmra.mxu0 %v868
        %v1257 = vpop.f32.mrf.mxu0
        %v1258 = vadd.f32 0.0, %v1257
        %v1259 = vpop.f32.mrf.mxu0
        %v1260 = vadd.f32 0.0, %v1259
        %1261 = vmatmul.bf16.gmra.mxu0 %v869
        %v1262 = vpop.f32.mrf.mxu0
        %v1263 = vadd.f32 0.0, %v1262
        %v1264 = vpop.f32.mrf.mxu0
        %v1265 = vadd.f32 0.0, %v1264
        %1266 = vmatmul.bf16.gmra.mxu0 %v870
        %v1267 = vpop.f32.mrf.mxu0
        %v1268 = vadd.f32 0.0, %v1267
        %v1269 = vpop.f32.mrf.mxu0
        %v1270 = vadd.f32 0.0, %v1269
        %1271 = vdwg.mxu0
        %v1272 = vpack.c.bf16 %v1255, %v1253
        %v1273 = vpack.c.bf16 %v1260, %v1258
        %v1274 = vpack.c.bf16 %v1265, %v1263
        %v1275 = vpack.c.bf16 %v1270, %v1268
        %v1276 = vld [vmem:[%s6] sm:$0x1]
        %vm1277 = vcmask 523264
        %v1279 = vsel %vm1277, %v1276, 0
        %1281 = vmatpush.bf16.msra.mxu0 0
        %1282 = vmatpush.bf16.msra.mxu0 0
        %1283 = vmatpush.bf16.msra.mxu0 0
        %1284 = vmatpush.bf16.msra.mxu0 0
        %1285 = vmatpush.bf16.msra.mxu0 %v1275
        %1286 = vmatpush.bf16.msra.mxu0 %v1274
        %1287 = vmatpush.bf16.msra.mxu0 %v1273
        %1288 = vmatpush.bf16.msra.mxu0 %v1272
        %1289 = vmatmul.bf16.gmra.mxu0 %v1279
        %v1290 = vpop.f32.mrf.mxu0
        %v1291 = vadd.f32 0.0, %v1290
        %v1292 = vpop.f32.mrf.mxu0
        %1293 = vdwg.mxu0
        %v1294 = vld [vmem:[%s9] sm:$0xff]
        %v1295 = vld [vmem:[%s9 + $0x8] sm:$0x1]
        %v1296 = vperm.slane %v1295, 0
        %vm1297 = vcmask 64512
        %v1299 = vsel %vm1297, %v1291, 0
        %1301 = vmatpush.msra.mxu0 0.0
        %1302 = vmatpush.msra.mxu0 0.0
        %1303 = vmatpush.msra.mxu0 0.0
        %1304 = vmatpush.msra.mxu0 0.0
        %1305 = vmatpush.msra.mxu0 0.0
        %1306 = vmatpush.msra.mxu0 0.0
        %1307 = vmatpush.msra.mxu0 0.0
        %1308 = vmatpush.msra.mxu0 0.0
        %1309 = vmatpush.msra.mxu0 0.0
        %1310 = vmatpush.msra.mxu0 0.0
        %1311 = vmatpush.msra.mxu0 0.0
        %1312 = vmatpush.msra.mxu0 0.0
        %1313 = vmatpush.msra.mxu0 0.0
        %1314 = vmatpush.msra.mxu0 0.0
        %1315 = vmatpush.msra.mxu0 0.0
        %1316 = vmatpush.msra.mxu0 %v1294
        %1317 = vmatmul.f32.gmra.mxu0 %v1299
        %v1318 = vpop.f32.mrf.mxu0
        %v1319 = vadd.f32 %v1296, %v1318
        %1320 = vdwg.mxu0
        %v1321 = vmax.f32 %v1319, 0.0
        %v1322 = vld [vmem:[%s10] sm:$0xf]
        %v1323 = vld [vmem:[%s10 + $0x4] sm:$0x1]
        %v1324 = vperm.slane %v1323, 0
        %vm1325 = vcmask 31744
        %v1327 = vsel %vm1325, %v1321, 0
        %vm1329 = vcmask 1043456
        %v1331 = vsel %vm1329, %v1322, 0
        %1333 = vmatpush.msra.mxu0 0.0
        %1334 = vmatpush.msra.mxu0 0.0
        %1335 = vmatpush.msra.mxu0 0.0
        %1336 = vmatpush.msra.mxu0 0.0
        %1337 = vmatpush.msra.mxu0 0.0
        %1338 = vmatpush.msra.mxu0 0.0
        %1339 = vmatpush.msra.mxu0 0.0
        %1340 = vmatpush.msra.mxu0 0.0
        %1341 = vmatpush.msra.mxu0 0.0
        %1342 = vmatpush.msra.mxu0 0.0
        %1343 = vmatpush.msra.mxu0 0.0
        %1344 = vmatpush.msra.mxu0 0.0
        %1345 = vmatpush.msra.mxu0 0.0
        %1346 = vmatpush.msra.mxu0 0.0
        %1347 = vmatpush.msra.mxu0 0.0
        %1348 = vmatpush.msra.mxu0 %v1331
        %1349 = vmatmul.f32.gmra.mxu0 %v1327
        %v1350 = vpop.f32.mrf.mxu0
        %v1351 = vadd.f32 %v1324, %v1350
        %1352 = vdwg.mxu0
        %v1353 = vxor.u32 %v1351, 2147483648
        %v1354 = vmul.f32 %v1353, 1.442695
        %v1355 = vpow.pop %v1354
        %v1356 = vadd.f32 %v1355, 1.0
        %v1357 = vrcp.pop %v1356
        %v1358 = vmul.f32 %v1356, %v1357
        %v1359 = vsub.f32 1.0, %v1358
        %v1360 = vmul.f32 %v1357, %v1359
        %v1361 = vadd.f32 %v1357, %v1360
        %vm1362 = vweird.f32 %v1356
        %vm1363 = vweird.f32 %v1357
        %vm1364 = vmor %vm1362, %vm1363
        %v1365 = vsel %vm1364, %v1357, %v1361
        %v1366 = vand.u32 2147483647, %v1356
        %vm1367 = vcmp.eq.f32.partialorder %v1366, 8.507059e+37
        %v1368 = vand.u32 %v1356, 2147483648
        %v1369 = vor.u32 1.1754944e-38, %v1368
        %v1370 = vsel %vm1367, %v1369, %v1365
        %v1371 = vmul.f32 1.0, %v1370
        %v1372 = vpack.c.bf16 %v1371, %v1371
        %v1373 = vld [vmem:[%s8] sm:$0xff]
        %v1375 = vunpack.c.l.b16 %v1373
        %v1376 = vunpack.c.h.b16 %v1373
        %v1377 = vpack.c.b16 %v1375, %v1375
        %v1378 = vpack.c.b16 %v1376, %v1376
        %v1380 = vsel %vm1297, %v1372, 0
        %v1383 = vsel %vm1329, %v1377, 0
        %v1386 = vsel %vm1329, %v1378, 0
        %1388 = vmatpush.bf16.msra.mxu0 0
        %1389 = vmatpush.bf16.msra.mxu0 0
        %1390 = vmatpush.bf16.msra.mxu0 0
        %1391 = vmatpush.bf16.msra.mxu0 0
        %1392 = vmatpush.bf16.msra.mxu0 0
        %1393 = vmatpush.bf16.msra.mxu0 0
        %1394 = vmatpush.bf16.msra.mxu0 0
        %1395 = vmatpush.bf16.msra.mxu0 %v1383
        %1396 = vmatmul.bf16.gmra.mxu0 %v1380
        %v1397 = vpop.f32.mrf.mxu0
        %v1398 = vadd.f32 0.0, %v1397
        %v1399 = vpop.f32.mrf.mxu0
        %1400 = vdwg.mxu0
        %1401 = vmatpush.bf16.msra.mxu0 0
        %1402 = vmatpush.bf16.msra.mxu0 0
        %1403 = vmatpush.bf16.msra.mxu0 0
        %1404 = vmatpush.bf16.msra.mxu0 0
        %1405 = vmatpush.bf16.msra.mxu0 0
        %1406 = vmatpush.bf16.msra.mxu0 0
        %1407 = vmatpush.bf16.msra.mxu0 0
        %1408 = vmatpush.bf16.msra.mxu0 %v1386
        %1409 = vmatmul.bf16.gmra.mxu0 %v1380
        %v1410 = vpop.f32.mrf.mxu0
        %v1411 = vadd.f32 0.0, %v1410
        %v1412 = vpop.f32.mrf.mxu0
        %1413 = vdwg.mxu0
        %v1414 = vld [vmem:[%s7] sm:$0xf]
        %v1415 = vld [vmem:[%s7 + $0x4] sm:$0xf]
        %v1416 = vld [vmem:[%s7 + $0x8] sm:$0xf]
        %v1417 = vld [vmem:[%s7 + $0xc] sm:$0xf]
        %v1418 = vld [vmem:[%s7 + $0x10] sm:$0xf]
        %v1419 = vld [vmem:[%s7 + $0x14] sm:$0xf]
        %v1420 = vld [vmem:[%s7 + $0x18] sm:$0xf]
        %v1421 = vld [vmem:[%s7 + $0x1c] sm:$0xf]
        %v1422 = vpack.c.bf16 %v1398, %v1398
        %v1423 = vpack.c.bf16 %v1411, %v1411
        %v1424 = vld [vmem:[%s2 + $0x1] sm:$0x3]
        %v1426 = vperm.slane %v1424, 0
        %v1427 = vperm.slane %v1424, 1
        %v1430 = vadd.f32 %v1195, %v1426
        %v1431 = vadd.f32 %v1224, %v1427
        %v1432 = vadd.f32 %v1197, %v1426
        %v1433 = vadd.f32 %v1226, %v1427
        %v1434 = vadd.f32 %v1200, %v1426
        %v1435 = vadd.f32 %v1229, %v1427
        %v1436 = vadd.f32 %v1202, %v1426
        %v1437 = vadd.f32 %v1231, %v1427
        %v1438 = vadd.f32 %v1205, %v1426
        %v1439 = vadd.f32 %v1234, %v1427
        %v1440 = vadd.f32 %v1207, %v1426
        %v1441 = vadd.f32 %v1236, %v1427
        %v1442 = vadd.f32 %v1210, %v1426
        %v1443 = vadd.f32 %v1239, %v1427
        %v1444 = vadd.f32 %v1212, %v1426
        %v1445 = vadd.f32 %v1241, %v1427
        %v1446 = vxor.u32 %v1430, 2147483648
        %v1447 = vxor.u32 %v1431, 2147483648
        %v1448 = vxor.u32 %v1432, 2147483648
        %v1449 = vxor.u32 %v1433, 2147483648
        %v1450 = vxor.u32 %v1434, 2147483648
        %v1451 = vxor.u32 %v1435, 2147483648
        %v1452 = vxor.u32 %v1436, 2147483648
        %v1453 = vxor.u32 %v1437, 2147483648
        %v1454 = vxor.u32 %v1438, 2147483648
        %v1455 = vxor.u32 %v1439, 2147483648
        %v1456 = vxor.u32 %v1440, 2147483648
        %v1457 = vxor.u32 %v1441, 2147483648
        %v1458 = vxor.u32 %v1442, 2147483648
        %v1459 = vxor.u32 %v1443, 2147483648
        %v1460 = vxor.u32 %v1444, 2147483648
        %v1461 = vxor.u32 %v1445, 2147483648
        %v1462 = vmul.f32 %v1446, 1.442695
        %v1463 = vpow.pop %v1462
        %v1464 = vmul.f32 %v1447, 1.442695
        %v1465 = vpow.pop %v1464
        %v1466 = vmul.f32 %v1448, 1.442695
        %v1467 = vpow.pop %v1466
        %v1468 = vmul.f32 %v1449, 1.442695
        %v1469 = vpow.pop %v1468
        %v1470 = vmul.f32 %v1450, 1.442695
        %v1471 = vpow.pop %v1470
        %v1472 = vmul.f32 %v1451, 1.442695
        %v1473 = vpow.pop %v1472
        %v1474 = vmul.f32 %v1452, 1.442695
        %v1475 = vpow.pop %v1474
        %v1476 = vmul.f32 %v1453, 1.442695
        %v1477 = vpow.pop %v1476
        %v1478 = vmul.f32 %v1454, 1.442695
        %v1479 = vpow.pop %v1478
        %v1480 = vmul.f32 %v1455, 1.442695
        %v1481 = vpow.pop %v1480
        %v1482 = vmul.f32 %v1456, 1.442695
        %v1483 = vpow.pop %v1482
        %v1484 = vmul.f32 %v1457, 1.442695
        %v1485 = vpow.pop %v1484
        %v1486 = vmul.f32 %v1458, 1.442695
        %v1487 = vpow.pop %v1486
        %v1488 = vmul.f32 %v1459, 1.442695
        %v1489 = vpow.pop %v1488
        %v1490 = vmul.f32 %v1460, 1.442695
        %v1491 = vpow.pop %v1490
        %v1492 = vmul.f32 %v1461, 1.442695
        %v1493 = vpow.pop %v1492
        %v1494 = vadd.f32 %v1463, 1.0
        %v1495 = vadd.f32 %v1465, 1.0
        %v1496 = vadd.f32 %v1467, 1.0
        %v1497 = vadd.f32 %v1469, 1.0
        %v1498 = vadd.f32 %v1471, 1.0
        %v1499 = vadd.f32 %v1473, 1.0
        %v1500 = vadd.f32 %v1475, 1.0
        %v1501 = vadd.f32 %v1477, 1.0
        %v1502 = vadd.f32 %v1479, 1.0
        %v1503 = vadd.f32 %v1481, 1.0
        %v1504 = vadd.f32 %v1483, 1.0
        %v1505 = vadd.f32 %v1485, 1.0
        %v1506 = vadd.f32 %v1487, 1.0
        %v1507 = vadd.f32 %v1489, 1.0
        %v1508 = vadd.f32 %v1491, 1.0
        %v1509 = vadd.f32 %v1493, 1.0
        %v1510 = vrcp.pop %v1494
        %v1511 = vmul.f32 %v1494, %v1510
        %v1512 = vsub.f32 1.0, %v1511
        %v1513 = vmul.f32 %v1510, %v1512
        %v1514 = vadd.f32 %v1510, %v1513
        %vm1515 = vweird.f32 %v1494
        %vm1516 = vweird.f32 %v1510
        %vm1517 = vmor %vm1515, %vm1516
        %v1518 = vsel %vm1517, %v1510, %v1514
        %v1519 = vand.u32 2147483647, %v1494
        %vm1520 = vcmp.eq.f32.partialorder %v1519, 8.507059e+37
        %v1521 = vand.u32 %v1494, 2147483648
        %v1522 = vor.u32 1.1754944e-38, %v1521
        %v1523 = vsel %vm1520, %v1522, %v1518
        %v1524 = vmul.f32 1.0, %v1523
        %v1525 = vrcp.pop %v1495
        %v1526 = vmul.f32 %v1495, %v1525
        %v1527 = vsub.f32 1.0, %v1526
        %v1528 = vmul.f32 %v1525, %v1527
        %v1529 = vadd.f32 %v1525, %v1528
        %vm1530 = vweird.f32 %v1495
        %vm1531 = vweird.f32 %v1525
        %vm1532 = vmor %vm1530, %vm1531
        %v1533 = vsel %vm1532, %v1525, %v1529
        %v1534 = vand.u32 2147483647, %v1495
        %vm1535 = vcmp.eq.f32.partialorder %v1534, 8.507059e+37
        %v1536 = vand.u32 %v1495, 2147483648
        %v1537 = vor.u32 1.1754944e-38, %v1536
        %v1538 = vsel %vm1535, %v1537, %v1533
        %v1539 = vmul.f32 1.0, %v1538
        %v1540 = vrcp.pop %v1496
        %v1541 = vmul.f32 %v1496, %v1540
        %v1542 = vsub.f32 1.0, %v1541
        %v1543 = vmul.f32 %v1540, %v1542
        %v1544 = vadd.f32 %v1540, %v1543
        %vm1545 = vweird.f32 %v1496
        %vm1546 = vweird.f32 %v1540
        %vm1547 = vmor %vm1545, %vm1546
        %v1548 = vsel %vm1547, %v1540, %v1544
        %v1549 = vand.u32 2147483647, %v1496
        %vm1550 = vcmp.eq.f32.partialorder %v1549, 8.507059e+37
        %v1551 = vand.u32 %v1496, 2147483648
        %v1552 = vor.u32 1.1754944e-38, %v1551
        %v1553 = vsel %vm1550, %v1552, %v1548
        %v1554 = vmul.f32 1.0, %v1553
        %v1555 = vrcp.pop %v1497
        %v1556 = vmul.f32 %v1497, %v1555
        %v1557 = vsub.f32 1.0, %v1556
        %v1558 = vmul.f32 %v1555, %v1557
        %v1559 = vadd.f32 %v1555, %v1558
        %vm1560 = vweird.f32 %v1497
        %vm1561 = vweird.f32 %v1555
        %vm1562 = vmor %vm1560, %vm1561
        %v1563 = vsel %vm1562, %v1555, %v1559
        %v1564 = vand.u32 2147483647, %v1497
        %vm1565 = vcmp.eq.f32.partialorder %v1564, 8.507059e+37
        %v1566 = vand.u32 %v1497, 2147483648
        %v1567 = vor.u32 1.1754944e-38, %v1566
        %v1568 = vsel %vm1565, %v1567, %v1563
        %v1569 = vmul.f32 1.0, %v1568
        %v1570 = vrcp.pop %v1498
        %v1571 = vmul.f32 %v1498, %v1570
        %v1572 = vsub.f32 1.0, %v1571
        %v1573 = vmul.f32 %v1570, %v1572
        %v1574 = vadd.f32 %v1570, %v1573
        %vm1575 = vweird.f32 %v1498
        %vm1576 = vweird.f32 %v1570
        %vm1577 = vmor %vm1575, %vm1576
        %v1578 = vsel %vm1577, %v1570, %v1574
        %v1579 = vand.u32 2147483647, %v1498
        %vm1580 = vcmp.eq.f32.partialorder %v1579, 8.507059e+37
        %v1581 = vand.u32 %v1498, 2147483648
        %v1582 = vor.u32 1.1754944e-38, %v1581
        %v1583 = vsel %vm1580, %v1582, %v1578
        %v1584 = vmul.f32 1.0, %v1583
        %v1585 = vrcp.pop %v1499
        %v1586 = vmul.f32 %v1499, %v1585
        %v1587 = vsub.f32 1.0, %v1586
        %v1588 = vmul.f32 %v1585, %v1587
        %v1589 = vadd.f32 %v1585, %v1588
        %vm1590 = vweird.f32 %v1499
        %vm1591 = vweird.f32 %v1585
        %vm1592 = vmor %vm1590, %vm1591
        %v1593 = vsel %vm1592, %v1585, %v1589
        %v1594 = vand.u32 2147483647, %v1499
        %vm1595 = vcmp.eq.f32.partialorder %v1594, 8.507059e+37
        %v1596 = vand.u32 %v1499, 2147483648
        %v1597 = vor.u32 1.1754944e-38, %v1596
        %v1598 = vsel %vm1595, %v1597, %v1593
        %v1599 = vmul.f32 1.0, %v1598
        %v1600 = vrcp.pop %v1500
        %v1601 = vmul.f32 %v1500, %v1600
        %v1602 = vsub.f32 1.0, %v1601
        %v1603 = vmul.f32 %v1600, %v1602
        %v1604 = vadd.f32 %v1600, %v1603
        %vm1605 = vweird.f32 %v1500
        %vm1606 = vweird.f32 %v1600
        %vm1607 = vmor %vm1605, %vm1606
        %v1608 = vsel %vm1607, %v1600, %v1604
        %v1609 = vand.u32 2147483647, %v1500
        %vm1610 = vcmp.eq.f32.partialorder %v1609, 8.507059e+37
        %v1611 = vand.u32 %v1500, 2147483648
        %v1612 = vor.u32 1.1754944e-38, %v1611
        %v1613 = vsel %vm1610, %v1612, %v1608
        %v1614 = vmul.f32 1.0, %v1613
        %v1615 = vrcp.pop %v1501
        %v1616 = vmul.f32 %v1501, %v1615
        %v1617 = vsub.f32 1.0, %v1616
        %v1618 = vmul.f32 %v1615, %v1617
        %v1619 = vadd.f32 %v1615, %v1618
        %vm1620 = vweird.f32 %v1501
        %vm1621 = vweird.f32 %v1615
        %vm1622 = vmor %vm1620, %vm1621
        %v1623 = vsel %vm1622, %v1615, %v1619
        %v1624 = vand.u32 2147483647, %v1501
        %vm1625 = vcmp.eq.f32.partialorder %v1624, 8.507059e+37
        %v1626 = vand.u32 %v1501, 2147483648
        %v1627 = vor.u32 1.1754944e-38, %v1626
        %v1628 = vsel %vm1625, %v1627, %v1623
        %v1629 = vmul.f32 1.0, %v1628
        %v1630 = vrcp.pop %v1502
        %v1631 = vmul.f32 %v1502, %v1630
        %v1632 = vsub.f32 1.0, %v1631
        %v1633 = vmul.f32 %v1630, %v1632
        %v1634 = vadd.f32 %v1630, %v1633
        %vm1635 = vweird.f32 %v1502
        %vm1636 = vweird.f32 %v1630
        %vm1637 = vmor %vm1635, %vm1636
        %v1638 = vsel %vm1637, %v1630, %v1634
        %v1639 = vand.u32 2147483647, %v1502
        %vm1640 = vcmp.eq.f32.partialorder %v1639, 8.507059e+37
        %v1641 = vand.u32 %v1502, 2147483648
        %v1642 = vor.u32 1.1754944e-38, %v1641
        %v1643 = vsel %vm1640, %v1642, %v1638
        %v1644 = vmul.f32 1.0, %v1643
        %v1645 = vrcp.pop %v1503
        %v1646 = vmul.f32 %v1503, %v1645
        %v1647 = vsub.f32 1.0, %v1646
        %v1648 = vmul.f32 %v1645, %v1647
        %v1649 = vadd.f32 %v1645, %v1648
        %vm1650 = vweird.f32 %v1503
        %vm1651 = vweird.f32 %v1645
        %vm1652 = vmor %vm1650, %vm1651
        %v1653 = vsel %vm1652, %v1645, %v1649
        %v1654 = vand.u32 2147483647, %v1503
        %vm1655 = vcmp.eq.f32.partialorder %v1654, 8.507059e+37
        %v1656 = vand.u32 %v1503, 2147483648
        %v1657 = vor.u32 1.1754944e-38, %v1656
        %v1658 = vsel %vm1655, %v1657, %v1653
        %v1659 = vmul.f32 1.0, %v1658
        %v1660 = vrcp.pop %v1504
        %v1661 = vmul.f32 %v1504, %v1660
        %v1662 = vsub.f32 1.0, %v1661
        %v1663 = vmul.f32 %v1660, %v1662
        %v1664 = vadd.f32 %v1660, %v1663
        %vm1665 = vweird.f32 %v1504
        %vm1666 = vweird.f32 %v1660
        %vm1667 = vmor %vm1665, %vm1666
        %v1668 = vsel %vm1667, %v1660, %v1664
        %v1669 = vand.u32 2147483647, %v1504
        %vm1670 = vcmp.eq.f32.partialorder %v1669, 8.507059e+37
        %v1671 = vand.u32 %v1504, 2147483648
        %v1672 = vor.u32 1.1754944e-38, %v1671
        %v1673 = vsel %vm1670, %v1672, %v1668
        %v1674 = vmul.f32 1.0, %v1673
        %v1675 = vrcp.pop %v1505
        %v1676 = vmul.f32 %v1505, %v1675
        %v1677 = vsub.f32 1.0, %v1676
        %v1678 = vmul.f32 %v1675, %v1677
        %v1679 = vadd.f32 %v1675, %v1678
        %vm1680 = vweird.f32 %v1505
        %vm1681 = vweird.f32 %v1675
        %vm1682 = vmor %vm1680, %vm1681
        %v1683 = vsel %vm1682, %v1675, %v1679
        %v1684 = vand.u32 2147483647, %v1505
        %vm1685 = vcmp.eq.f32.partialorder %v1684, 8.507059e+37
        %v1686 = vand.u32 %v1505, 2147483648
        %v1687 = vor.u32 1.1754944e-38, %v1686
        %v1688 = vsel %vm1685, %v1687, %v1683
        %v1689 = vmul.f32 1.0, %v1688
        %v1690 = vrcp.pop %v1506
        %v1691 = vmul.f32 %v1506, %v1690
        %v1692 = vsub.f32 1.0, %v1691
        %v1693 = vmul.f32 %v1690, %v1692
        %v1694 = vadd.f32 %v1690, %v1693
        %vm1695 = vweird.f32 %v1506
        %vm1696 = vweird.f32 %v1690
        %vm1697 = vmor %vm1695, %vm1696
        %v1698 = vsel %vm1697, %v1690, %v1694
        %v1699 = vand.u32 2147483647, %v1506
        %vm1700 = vcmp.eq.f32.partialorder %v1699, 8.507059e+37
        %v1701 = vand.u32 %v1506, 2147483648
        %v1702 = vor.u32 1.1754944e-38, %v1701
        %v1703 = vsel %vm1700, %v1702, %v1698
        %v1704 = vmul.f32 1.0, %v1703
        %v1705 = vrcp.pop %v1507
        %v1706 = vmul.f32 %v1507, %v1705
        %v1707 = vsub.f32 1.0, %v1706
        %v1708 = vmul.f32 %v1705, %v1707
        %v1709 = vadd.f32 %v1705, %v1708
        %vm1710 = vweird.f32 %v1507
        %vm1711 = vweird.f32 %v1705
        %vm1712 = vmor %vm1710, %vm1711
        %v1713 = vsel %vm1712, %v1705, %v1709
        %v1714 = vand.u32 2147483647, %v1507
        %vm1715 = vcmp.eq.f32.partialorder %v1714, 8.507059e+37
        %v1716 = vand.u32 %v1507, 2147483648
        %v1717 = vor.u32 1.1754944e-38, %v1716
        %v1718 = vsel %vm1715, %v1717, %v1713
        %v1719 = vmul.f32 1.0, %v1718
        %v1720 = vrcp.pop %v1508
        %v1721 = vmul.f32 %v1508, %v1720
        %v1722 = vsub.f32 1.0, %v1721
        %v1723 = vmul.f32 %v1720, %v1722
        %v1724 = vadd.f32 %v1720, %v1723
        %vm1725 = vweird.f32 %v1508
        %vm1726 = vweird.f32 %v1720
        %vm1727 = vmor %vm1725, %vm1726
        %v1728 = vsel %vm1727, %v1720, %v1724
        %v1729 = vand.u32 2147483647, %v1508
        %vm1730 = vcmp.eq.f32.partialorder %v1729, 8.507059e+37
        %v1731 = vand.u32 %v1508, 2147483648
        %v1732 = vor.u32 1.1754944e-38, %v1731
        %v1733 = vsel %vm1730, %v1732, %v1728
        %v1734 = vmul.f32 1.0, %v1733
        %v1735 = vrcp.pop %v1509
        %v1736 = vmul.f32 %v1509, %v1735
        %v1737 = vsub.f32 1.0, %v1736
        %v1738 = vmul.f32 %v1735, %v1737
        %v1739 = vadd.f32 %v1735, %v1738
        %vm1740 = vweird.f32 %v1509
        %vm1741 = vweird.f32 %v1735
        %vm1742 = vmor %vm1740, %vm1741
        %v1743 = vsel %vm1742, %v1735, %v1739
        %v1744 = vand.u32 2147483647, %v1509
        %vm1745 = vcmp.eq.f32.partialorder %v1744, 8.507059e+37
        %v1746 = vand.u32 %v1509, 2147483648
        %v1747 = vor.u32 1.1754944e-38, %v1746
        %v1748 = vsel %vm1745, %v1747, %v1743
        %v1749 = vmul.f32 1.0, %v1748
        %v1758 = vunpack.c.l.b16 %v1414
        %v1759 = vunpack.c.l.b16 %v1415
        %v1760 = vunpack.c.l.b16 %v1416
        %v1761 = vunpack.c.l.b16 %v1417
        %v1762 = vunpack.c.l.b16 %v1418
        %v1763 = vunpack.c.l.b16 %v1419
        %v1764 = vunpack.c.l.b16 %v1420
        %v1765 = vunpack.c.l.b16 %v1421
        %v1766 = vpack.c.b16 %v1759, %v1758
        %v1767 = vpack.c.b16 %v1761, %v1760
        %v1768 = vpack.c.b16 %v1763, %v1762
        %v1769 = vpack.c.b16 %v1765, %v1764
        %vm1770 = vcmask 15360
        %v1772 = vsel %vm1770, %v1766, 0
        %v1775 = vsel %vm1770, %v1767, 0
        %v1778 = vsel %vm1770, %v1768, 0
        %v1781 = vsel %vm1770, %v1769, 0
        %vm1783 = vcmask 1040384
        %v1785 = vsel %vm1783, %v1422, 0
        %v1788 = vsel %vm1783, %v1423, 0
        %1790 = vmatpush.bf16.msra.mxu0 0
        %1791 = vmatpush.bf16.msra.mxu0 0
        %1792 = vmatpush.bf16.msra.mxu0 0
        %1793 = vmatpush.bf16.msra.mxu0 0
        %1794 = vmatpush.bf16.msra.mxu0 0
        %1795 = vmatpush.bf16.msra.mxu0 0
        %1796 = vmatpush.bf16.msra.mxu0 0
        %1797 = vmatpush.bf16.msra.mxu0 %v1785
        %1798 = vmatmul.bf16.gmra.mxu0 %v1772
        %v1799 = vpop.f32.mrf.mxu0
        %v1800 = vadd.f32 %v1524, %v1799
        %v1801 = vpop.f32.mrf.mxu0
        %v1802 = vadd.f32 %v1554, %v1801
        %1803 = vmatmul.bf16.gmra.mxu0 %v1775
        %v1804 = vpop.f32.mrf.mxu0
        %v1805 = vadd.f32 %v1584, %v1804
        %v1806 = vpop.f32.mrf.mxu0
        %v1807 = vadd.f32 %v1614, %v1806
        %1808 = vmatmul.bf16.gmra.mxu0 %v1778
        %v1809 = vpop.f32.mrf.mxu0
        %v1810 = vadd.f32 %v1644, %v1809
        %v1811 = vpop.f32.mrf.mxu0
        %v1812 = vadd.f32 %v1674, %v1811
        %1813 = vmatmul.bf16.gmra.mxu0 %v1781
        %v1814 = vpop.f32.mrf.mxu0
        %v1815 = vadd.f32 %v1704, %v1814
        %v1816 = vpop.f32.mrf.mxu0
        %v1817 = vadd.f32 %v1734, %v1816
        %1818 = vdwg.mxu0
        %1819 = vmatpush.bf16.msra.mxu0 0
        %1820 = vmatpush.bf16.msra.mxu0 0
        %1821 = vmatpush.bf16.msra.mxu0 0
        %1822 = vmatpush.bf16.msra.mxu0 0
        %1823 = vmatpush.bf16.msra.mxu0 0
        %1824 = vmatpush.bf16.msra.mxu0 0
        %1825 = vmatpush.bf16.msra.mxu0 0
        %1826 = vmatpush.bf16.msra.mxu0 %v1788
        %1827 = vmatmul.bf16.gmra.mxu0 %v1772
        %v1828 = vpop.f32.mrf.mxu0
        %v1829 = vadd.f32 %v1539, %v1828
        %v1830 = vpop.f32.mrf.mxu0
        %v1831 = vadd.f32 %v1569, %v1830
        %1832 = vmatmul.bf16.gmra.mxu0 %v1775
        %v1833 = vpop.f32.mrf.mxu0
        %v1834 = vadd.f32 %v1599, %v1833
        %v1835 = vpop.f32.mrf.mxu0
        %v1836 = vadd.f32 %v1629, %v1835
        %1837 = vmatmul.bf16.gmra.mxu0 %v1778
        %v1838 = vpop.f32.mrf.mxu0
        %v1839 = vadd.f32 %v1659, %v1838
        %v1840 = vpop.f32.mrf.mxu0
        %v1841 = vadd.f32 %v1689, %v1840
        %1842 = vmatmul.bf16.gmra.mxu0 %v1781
        %v1843 = vpop.f32.mrf.mxu0
        %v1844 = vadd.f32 %v1719, %v1843
        %v1845 = vpop.f32.mrf.mxu0
        %v1846 = vadd.f32 %v1749, %v1845
        %1847 = vdwg.mxu0
        %v1848 = vmul.f32 %v977, %v1800
        %v1849 = vmul.f32 %v1006, %v1829
        %v1850 = vmul.f32 %v979, %v1802
        %v1851 = vmul.f32 %v1008, %v1831
        %v1852 = vmul.f32 %v982, %v1805
        %v1853 = vmul.f32 %v1011, %v1834
        %v1854 = vmul.f32 %v984, %v1807
        %v1855 = vmul.f32 %v1013, %v1836
        %v1856 = vmul.f32 %v987, %v1810
        %v1857 = vmul.f32 %v1016, %v1839
        %v1858 = vmul.f32 %v989, %v1812
        %v1859 = vmul.f32 %v1018, %v1841
        %v1860 = vmul.f32 %v992, %v1815
        %v1861 = vmul.f32 %v1021, %v1844
        %v1862 = vmul.f32 %v994, %v1817
        %v1863 = vmul.f32 %v1023, %v1846
        %1864 = vst [vmem:[%s456] sm:$0xff] %v1848
        %1865 = vst [vmem:[%s456 + $0x8] sm:$0xff] %v1849
        %1866 = vst [vmem:[%s456 + $0x10] sm:$0xff] %v1850
        %1867 = vst [vmem:[%s456 + $0x18] sm:$0xff] %v1851
        %1868 = vst [vmem:[%s456 + $0x20] sm:$0xff] %v1852
        %1869 = vst [vmem:[%s456 + $0x28] sm:$0xff] %v1853
        %1870 = vst [vmem:[%s456 + $0x30] sm:$0xff] %v1854
        %1871 = vst [vmem:[%s456 + $0x38] sm:$0xff] %v1855
        %1872 = vst [vmem:[%s456 + $0x40] sm:$0xff] %v1856
        %1873 = vst [vmem:[%s456 + $0x48] sm:$0xff] %v1857
        %1874 = vst [vmem:[%s456 + $0x50] sm:$0xff] %v1858
        %1875 = vst [vmem:[%s456 + $0x58] sm:$0xff] %v1859
        %1876 = vst [vmem:[%s456 + $0x60] sm:$0xff] %v1860
        %1877 = vst [vmem:[%s456 + $0x68] sm:$0xff] %v1861
        %1878 = vst [vmem:[%s456 + $0x70] sm:$0xff] %v1862
        %1879 = vst [vmem:[%s456 + $0x78] sm:$0xff] %v1863
        %s1880 = sand.u32 %s274, 1
        %s1881 = scalar_lea.sflag [#allocation4], %s1880
        %s1882 = sand.u32 %s274, 1
        %s1883 = smul.addr %s1882, 128
        %s1884 = scalar_lea.vmem [#allocation10], %s1883
        // Predicated region
        $region81: #{tpu_custom_call.1} parent=63 // pred_check
          %p1885 = pneg %p284
        $region82: #{tpu_custom_call.1} parent=63 // pred_check_branch
          %1887 = sbr.rel (%p1885) target = $region84
        $region83: #{tpu_custom_call.1} parent=63 // pred_region
          %s1888 = smul.u32 8, %s30
          %1890 = vsyncadd %s1881, 0
          %s1891 = smul.addr %s1888, 2
          %s1892 = smul.addr %s1891, 8
          %s1893 = scalar_lea.hbm %s11, %s1892
          %s1894 = sshll.u32 %s1884, 4
          %s1895 = int_to_ptr.vmem [resolvable:$true] %s1894
          %s1896 = sshll.u32 %s1893, 4
          %s1897 = int_to_ptr.hbm [resolvable:$true] %s1896
          %1902 = dma.vmem_to_hbm [thread:$0]  %s1895, 2048, %s1897, %s1881, 256, 256, 16
        $region84: #{tpu_custom_call.1} parent=63 // pred_fallthru
          _
      $region64: #{tpu_custom_call.1} parent=5 // pred_fallthru
        _
      %p1903 = scmp.le.s32.totalorder 2, %s25
      // Predicated region
      $region85: #{tpu_custom_call.1} parent=5 // pred_check
        %p1904 = pneg %p1903
      $region86: #{tpu_custom_call.1} parent=5 // pred_check_branch
        %1906 = sbr.rel (%p1904) target = $region88
      $region87: #{tpu_custom_call.1} parent=5 // pred_region
        %s1907 = ssub.s32 %s25, 2
        // Predicated region
        $region89: #{tpu_custom_call.1} parent=87 // pred_check
          %p1908 = pneg %p290
        $region90: #{tpu_custom_call.1} parent=87 // pred_check_branch
          %1910 = sbr.rel (%p1908) target = $region92
        $region91: #{tpu_custom_call.1} parent=87 // pred_region
          %s1911 = sand.u32 %s275, 1
          %s1912 = scalar_lea.sflag [#allocation4], %s1911
          %s1913 = sand.u32 %s275, 1
          %s1914 = smul.addr %s1913, 128
          %s1915 = scalar_lea.vmem [#allocation10], %s1914
          %1917 = dma.done %s1912, 2048
        $region92: #{tpu_custom_call.1} parent=87 // pred_fallthru
          _
      $region88: #{tpu_custom_call.1} parent=5 // pred_fallthru
        _
    $region6: #{tpu_custom_call.1} parent=1 // loop_footer
      %s29 = sadd.s32 1, %s25
    $region7: #{tpu_custom_call.1} parent=1 // loop_footer_branch
      %24 = sbr.rel target = $region3
    $region8: #{tpu_custom_call.1} parent=1 // loop_exit
      _
    %1918 = vsyncpa [#allocation3], 1
    %s1919 = scalar_lea.sflag [#allocation3], 1
    %1920 = vsyncpa %s1919, 1
    %1921 = vsyncpa [#allocation6], 1
    %1922 = vsyncpa [#allocation9], 1
    %1923 = vsyncpa [#allocation4], 1
    %s1924 = scalar_lea.sflag [#allocation4], 1
    %1925 = vsyncpa %s1924, 1

</llo_original>
